<compile_context>
chip_gen: v6e
topology: v6e:2x2x1
jax: 0.10.0
libtpu: 0.0.40
codegen_flags: <defaults>
</compile_context>

<pallas_src>
import jax
import jax.numpy as jnp
from jax import lax
from jax.experimental import pallas as pl
from jax.experimental.pallas import tpu as pltpu

INPUT_SIZE = 90
HIDDEN = 30
NUM_TAGS = 2

INPUT_PAD = 128           # feature dim padded to a full lane group
HIDDEN_PAD = 32           # 4 * 32 = 128 lanes -> one full lane group of gates
TAGS_PAD = 128            # lane-dense output slab
TBLK = 8                  # timesteps per recurrence block (one sublane group)
MAX_TILE_T = 512          # max timesteps per grid step


def _round_up(n, m):
    return ((n + m - 1) // m) * m


def _lstm_tagger_kernel(x_ref, wih_ref, whh_ref, bg_ref, wout_ref, bout_ref,
                        out_ref, h_ref, c_ref, xg_ref, hbuf_ref):
    """One time-chunk of the forward pass.

    x_ref    : (TILE_T, 128)   input chunk (cols 90.. are zero)
    wih_ref  : (128, 128)      W_ih^T, rows 90.. zero, i/f/o cols prescaled 0.5
    whh_ref  : (32, 128)       W_hh^T, padded rows/cols, i/f/o cols prescaled 0.5
    bg_ref   : (1, 128)        b_ih + b_hh, padded, i/f/o cols prescaled 0.5
    wout_ref : (32, 128)       hidden2tag weight^T, padded
    bout_ref : (1, 128)        hidden2tag bias, padded
    out_ref  : (TILE_T, 128)   lane-dense logits (cols 0..1 valid)
    h_ref    : (1, 32)  VMEM   hidden-state carry across grid steps
    c_ref    : (1, 32)  VMEM   cell-state carry across grid steps
    xg_ref   : (TILE_T, 128)   scratch: input-side gate preactivations
    hbuf_ref : (TILE_T, 32)    scratch: hidden states of this chunk
    """
    HP = HIDDEN_PAD
    tile_t = x_ref.shape[0]
    n_blocks = tile_t // TBLK

    @pl.when(pl.program_id(0) == 0)
    def _init():
        h_ref[...] = jnp.zeros_like(h_ref)
        c_ref[...] = jnp.zeros_like(c_ref)

    # Input projection for the whole chunk at once (MXU), off the critical path.
    xg_ref[...] = (
        jnp.dot(x_ref[...], wih_ref[...], preferred_element_type=jnp.float32)
        + bg_ref[...]
    )

    whh = whh_ref[...]

    def block_step(blk, carry):
        h, c = carry  # each (1, 32)
        start = pl.multiple_of(blk * TBLK, TBLK)
        xg_blk = xg_ref[pl.ds(start, TBLK), :]          # one aligned (8,128) load
        hs = []
        for s in range(TBLK):                            # static -> fully visible
            gates = xg_blk[s:s + 1, :] + jnp.dot(
                h, whh, preferred_element_type=jnp.float32)      # (1, 128)
            # Single full-vreg EUP pass; i/f/o preactivations are prescaled by
            # 0.5, so sigmoid(x) = 0.5 * (1 + tanh(x/2)) is a VPU fixup.
            t = jnp.tanh(gates)
            i_g = 0.5 * (1.0 + t[:, 0 * HP:1 * HP])
            f_g = 0.5 * (1.0 + t[:, 1 * HP:2 * HP])
            g_g = t[:, 2 * HP:3 * HP]
            o_g = 0.5 * (1.0 + t[:, 3 * HP:4 * HP])
            c = f_g * c + i_g * g_g
            h = o_g * jnp.tanh(c)
            hs.append(h)
        # One aligned (8, 32) store per block instead of 8 masked (1, 30) stores.
        hbuf_ref[pl.ds(start, TBLK), :] = jnp.concatenate(hs, axis=0)
        return (h, c)

    unroll = True if n_blocks <= 16 else 8
    h_f, c_f = lax.fori_loop(0, n_blocks, block_step,
                             (h_ref[...], c_ref[...]), unroll=unroll)
    h_ref[...] = h_f
    c_ref[...] = c_f

    # hidden2tag for the whole chunk (MXU), lane-dense unmasked output store.
    out_ref[...] = (
        jnp.dot(hbuf_ref[...], wout_ref[...], preferred_element_type=jnp.float32)
        + bout_ref[...]
    )


@jax.jit
def lstm_tagger_forward(x, kparams):
    """x: any float array with total size divisible by 90. Returns (T, 2)."""
    x2d = jnp.reshape(x, (-1, INPUT_SIZE)).astype(jnp.float32)
    T = x2d.shape[0]

    # Balanced chunking: n_chunks grid steps of tile_t <= MAX_TILE_T timesteps,
    # tile_t a multiple of TBLK, minimal zero-padding at the tail.
    Tp8 = _round_up(T, TBLK)
    n_chunks = -(-Tp8 // MAX_TILE_T)
    tile_t = _round_up(-(-Tp8 // n_chunks), TBLK)
    Tp = tile_t * n_chunks

    x2d = jnp.pad(x2d, ((0, Tp - T), (0, INPUT_PAD - INPUT_SIZE)))

    wih_t, whh_t, bg, wout_t, bout = kparams
    grid = (n_chunks,)

    out = pl.pallas_call(
        _lstm_tagger_kernel,
        out_shape=jax.ShapeDtypeStruct((Tp, TAGS_PAD), jnp.float32),
        grid_spec=pltpu.PrefetchScalarGridSpec(
            num_scalar_prefetch=0,
            grid=grid,
            in_specs=[
                pl.BlockSpec((tile_t, INPUT_PAD), lambda i: (i, 0)),
                pl.BlockSpec((INPUT_PAD, 4 * HIDDEN_PAD), lambda i: (0, 0)),
                pl.BlockSpec((HIDDEN_PAD, 4 * HIDDEN_PAD), lambda i: (0, 0)),
                pl.BlockSpec((1, 4 * HIDDEN_PAD), lambda i: (0, 0)),
                pl.BlockSpec((HIDDEN_PAD, TAGS_PAD), lambda i: (0, 0)),
                pl.BlockSpec((1, TAGS_PAD), lambda i: (0, 0)),
            ],
            out_specs=pl.BlockSpec((tile_t, TAGS_PAD), lambda i: (i, 0)),
            scratch_shapes=[
                pltpu.VMEM((1, HIDDEN_PAD), jnp.float32),             # h carry
                pltpu.VMEM((1, HIDDEN_PAD), jnp.float32),             # c carry
                pltpu.VMEM((tile_t, 4 * HIDDEN_PAD), jnp.float32),    # xg
                pltpu.VMEM((tile_t, HIDDEN_PAD), jnp.float32),        # hidden buf
            ],
        ),
        compiler_params=pltpu.CompilerParams(
            dimension_semantics=("arbitrary",),   # h/c carried across grid steps
        ),
    )(x2d, wih_t, whh_t, bg, wout_t, bout)

    return out[:T, :NUM_TAGS]


def init_raw_params(key):
    """PyTorch-shaped parameters, uniform(-1/sqrt(H), 1/sqrt(H))."""
    k = 1.0 / jnp.sqrt(jnp.float32(HIDDEN))
    ks = jax.random.split(key, 6)
    w_ih = jax.random.uniform(ks[0], (4 * HIDDEN, INPUT_SIZE), jnp.float32, -k, k)
    w_hh = jax.random.uniform(ks[1], (4 * HIDDEN, HIDDEN), jnp.float32, -k, k)
    b_ih = jax.random.uniform(ks[2], (4 * HIDDEN,), jnp.float32, -k, k)
    b_hh = jax.random.uniform(ks[3], (4 * HIDDEN,), jnp.float32, -k, k)
    w_out = jax.random.uniform(ks[4], (NUM_TAGS, HIDDEN), jnp.float32, -k, k)
    b_out = jax.random.uniform(ks[5], (NUM_TAGS,), jnp.float32, -k, k)
    return (w_ih, w_hh, b_ih, b_hh, w_out, b_out)


def pack_params(raw):
    """Transpose + pad weights for the kernel's 128-lane gate layout.

    Each gate's 30 columns sit at the start of its own 32-lane group, zero
    padded; padded hidden units stay exactly zero through the recurrence.
    The i/f/o gate columns (and bias) are pre-scaled by 0.5 so the kernel can
    use a single tanh pass: sigmoid(x) = 0.5 * (1 + tanh(x/2)).  The padded
    i/f/o lanes then evaluate to 0.5 == sigmoid(0), exactly as before.
    """
    w_ih, w_hh, b_ih, b_hh, w_out, b_out = raw
    H, HP = HIDDEN, HIDDEN_PAD
    gate_scale = (0.5, 0.5, 1.0, 0.5)   # i, f, g, o

    def pad_gate_cols(w_t):  # (in, 4H) -> (in, 4HP), with per-gate prescale
        parts = []
        for g in range(4):
            p = w_t[:, g * H:(g + 1) * H] * gate_scale[g]
            parts.append(jnp.pad(p, ((0, 0), (0, HP - H))))
        return jnp.concatenate(parts, axis=1)

    wih_t = jnp.pad(pad_gate_cols(w_ih.T),
                    ((0, INPUT_PAD - INPUT_SIZE), (0, 0)))          # (128, 128)
    whh_t = jnp.pad(pad_gate_cols(w_hh.T), ((0, HP - H), (0, 0)))   # (32, 128)
    bg = pad_gate_cols((b_ih + b_hh)[None, :])                      # (1, 128)
    wout_t = jnp.pad(w_out.T, ((0, HP - H), (0, TAGS_PAD - NUM_TAGS)))  # (32, 128)
    bout = jnp.pad(b_out[None, :], ((0, 0), (0, TAGS_PAD - NUM_TAGS)))  # (1, 128)
    return (wih_t, whh_t, bg, wout_t, bout)


def _reference_forward(x, raw):
    """Pure-JAX reference of the PyTorch forward (for the correctness check)."""
    w_ih, w_hh, b_ih, b_hh, w_out, b_out = raw
    x2d = jnp.reshape(x, (-1, INPUT_SIZE)).astype(jnp.float32)
    H = HIDDEN
    wih_t, whh_t, bg = w_ih.T, w_hh.T, (b_ih + b_hh)[None, :]

    def step(carry, x_t):
        h, c = carry
        gates = x_t[None, :] @ wih_t + h @ whh_t + bg
        i_g = jax.nn.sigmoid(gates[:, 0:H])
        f_g = jax.nn.sigmoid(gates[:, H:2 * H])
        g_g = jnp.tanh(gates[:, 2 * H:3 * H])
        o_g = jax.nn.sigmoid(gates[:, 3 * H:4 * H])
        c_new = f_g * c + i_g * g_g
        h_new = o_g * jnp.tanh(c_new)
        return (h_new, c_new), h_new[0]

    init = (jnp.zeros((1, H), jnp.float32), jnp.zeros((1, H), jnp.float32))
    _, hs = lax.scan(step, init, x2d)
    return hs @ w_out.T + b_out[None, :]


if __name__ == "__main__":
    key = jax.random.PRNGKey(0)
    pkey, xkey = jax.random.split(key)
    raw_params = init_raw_params(pkey)
    kernel_params = pack_params(raw_params)

    # seq = 8 timesteps of 90 features (forward reshapes to (-1, 1, 90)).
    x = jax.random.normal(xkey, (8, INPUT_SIZE), jnp.float32)

    out = jax.block_until_ready(lstm_tagger_forward(x, kernel_params))
    ref = jax.block_until_ready(_reference_forward(x, raw_params))

    assert out.shape == (8, NUM_TAGS)
    assert jnp.allclose(out, ref, atol=1e-4, rtol=1e-4)

    print("KERNEL_OK")
</pallas_src>

<mosaic_0001>
module attributes {stable_mosaic.version = 11 : i64} {
  func.func @_lstm_tagger_kernel(%arg0: i32, %arg1: memref<8x128xf32, #tpu.memory_space<vmem>>, %arg2: memref<128x128xf32, #tpu.memory_space<vmem>>, %arg3: memref<32x128xf32, #tpu.memory_space<vmem>>, %arg4: memref<1x128xf32, #tpu.memory_space<vmem>>, %arg5: memref<32x128xf32, #tpu.memory_space<vmem>>, %arg6: memref<1x128xf32, #tpu.memory_space<vmem>>, %arg7: memref<8x128xf32, #tpu.memory_space<vmem>>, %arg8: memref<1x32xf32, #tpu.memory_space<vmem>>, %arg9: memref<1x32xf32, #tpu.memory_space<vmem>>, %arg10: memref<8x128xf32, #tpu.memory_space<vmem>>, %arg11: memref<8x32xf32, #tpu.memory_space<vmem>>) attributes {dimension_semantics = [#tpu.dimension_semantics<arbitrary>], iteration_bounds = array<i64: 1>, scalar_prefetch = 0 : i64, scratch_operands = 4 : i64, tpu.core_type = #tpu.core_type<tc>, window_params = [{transform_indices = @transform_0, window_bounds = array<i64: 8, 128>}, {pipeline_mode = #tpu.pipeline_mode<synchronous>, transform_indices = @transform_1, window_bounds = array<i64: 128, 128>}, {pipeline_mode = #tpu.pipeline_mode<synchronous>, transform_indices = @transform_2, window_bounds = array<i64: 32, 128>}, {pipeline_mode = #tpu.pipeline_mode<synchronous>, transform_indices = @transform_3, window_bounds = array<i64: 1, 128>}, {pipeline_mode = #tpu.pipeline_mode<synchronous>, transform_indices = @transform_4, window_bounds = array<i64: 32, 128>}, {pipeline_mode = #tpu.pipeline_mode<synchronous>, transform_indices = @transform_5, window_bounds = array<i64: 1, 128>}, {transform_indices = @transform_6, window_bounds = array<i64: 8, 128>}]} {
    %c0_i32 = arith.constant 0 : i32
    %0 = arith.cmpi eq, %arg0, %c0_i32 : i32
    %1 = arith.extui %0 : i1 to i32
    %c0_i32_0 = arith.constant 0 : i32
    %2 = arith.cmpi ne, %1, %c0_i32_0 : i32
    scf.if %2 {
      %cst_86 = arith.constant 0.000000e+00 : f32
      %229 = vector.broadcast %cst_86 : f32 to vector<1x32xf32>
      %c0_87 = arith.constant 0 : index
      %c0_88 = arith.constant 0 : index
      %230 = vector.load %arg8[%c0_87, %c0_88] : memref<1x32xf32, #tpu.memory_space<vmem>>, vector<1x32xf32>
      tpu.vector_store %arg8[%c0_87, %c0_88], %229 {strides = array<i32>} : memref<1x32xf32, #tpu.memory_space<vmem>>, vector<1x32xf32>,
      %cst_89 = arith.constant 0.000000e+00 : f32
      %231 = vector.broadcast %cst_89 : f32 to vector<1x32xf32>
      %c0_90 = arith.constant 0 : index
      %c0_91 = arith.constant 0 : index
      %232 = vector.load %arg9[%c0_90, %c0_91] : memref<1x32xf32, #tpu.memory_space<vmem>>, vector<1x32xf32>
      tpu.vector_store %arg9[%c0_90, %c0_91], %231 {strides = array<i32>} : memref<1x32xf32, #tpu.memory_space<vmem>>, vector<1x32xf32>,
    } else {
    }
    %c0 = arith.constant 0 : index
    %c0_1 = arith.constant 0 : index
    %3 = vector.load %arg1[%c0, %c0_1] : memref<8x128xf32, #tpu.memory_space<vmem>>, vector<8x128xf32>
    %c0_2 = arith.constant 0 : index
    %c0_3 = arith.constant 0 : index
    %4 = vector.load %arg2[%c0_2, %c0_3] : memref<128x128xf32, #tpu.memory_space<vmem>>, vector<128x128xf32>
    %cst = arith.constant dense<0.000000e+00> : vector<8x128xf32>
    %5 = tpu.matmul %3, %4, %cst {dimension_numbers = #tpu.dot_dimension_numbers<[1], [0], [0], [1], [0, 0, 1, 1], [], []>} : vector<8x128xf32>, vector<128x128xf32>, vector<8x128xf32> -> vector<8x128xf32>
    %c0_4 = arith.constant 0 : index
    %c0_5 = arith.constant 0 : index
    %6 = vector.load %arg4[%c0_4, %c0_5] : memref<1x128xf32, #tpu.memory_space<vmem>>, vector<1x128xf32>
    %7 = vector.broadcast %6 : vector<1x128xf32> to vector<8x128xf32>
    %8 = arith.addf %5, %7 : vector<8x128xf32>
    %c0_6 = arith.constant 0 : index
    %c0_7 = arith.constant 0 : index
    %9 = vector.load %arg10[%c0_6, %c0_7] : memref<8x128xf32, #tpu.memory_space<vmem>>, vector<8x128xf32>
    tpu.vector_store %arg10[%c0_6, %c0_7], %8 {strides = array<i32>} : memref<8x128xf32, #tpu.memory_space<vmem>>, vector<8x128xf32>,
    %c0_8 = arith.constant 0 : index
    %c0_9 = arith.constant 0 : index
    %10 = vector.load %arg3[%c0_8, %c0_9] : memref<32x128xf32, #tpu.memory_space<vmem>>, vector<32x128xf32>
    %c0_10 = arith.constant 0 : index
    %c0_11 = arith.constant 0 : index
    %11 = vector.load %arg8[%c0_10, %c0_11] : memref<1x32xf32, #tpu.memory_space<vmem>>, vector<1x32xf32>
    %c0_12 = arith.constant 0 : index
    %c0_13 = arith.constant 0 : index
    %12 = vector.load %arg9[%c0_12, %c0_13] : memref<1x32xf32, #tpu.memory_space<vmem>>, vector<1x32xf32>
    %c0_i32_14 = arith.constant 0 : i32
    %c8_i32 = arith.constant 8 : i32
    %13 = arith.muli %c0_i32_14, %c8_i32 : i32
    %14 = tpu.assume_multiple %13, 8 : i32
    %15 = arith.index_cast %14 : i32 to index
    %c0_15 = arith.constant 0 : index
    %16 = vector.load %arg10[%15, %c0_15] : memref<8x128xf32, #tpu.memory_space<vmem>>, vector<8x128xf32>
    %17 = vector.extract_strided_slice %16 {offsets = [0, 0], sizes = [1, 128], strides = [1, 1]} : vector<8x128xf32> to vector<1x128xf32>
    %cst_16 = arith.constant dense<0.000000e+00> : vector<1x128xf32>
    %18 = tpu.matmul %11, %10, %cst_16 {dimension_numbers = #tpu.dot_dimension_numbers<[1], [0], [0], [1], [0, 0, 1, 1], [], []>} : vector<1x32xf32>, vector<32x128xf32>, vector<1x128xf32> -> vector<1x128xf32>
    %19 = arith.addf %17, %18 : vector<1x128xf32>
    %20 = math.tanh %19 : vector<1x128xf32>
    %21 = vector.extract_strided_slice %20 {offsets = [0, 0], sizes = [1, 32], strides = [1, 1]} : vector<1x128xf32> to vector<1x32xf32>
    %cst_17 = arith.constant 1.000000e+00 : f32
    %22 = vector.broadcast %cst_17 : f32 to vector<1x32xf32>
    %23 = arith.addf %22, %21 : vector<1x32xf32>
    %cst_18 = arith.constant 5.000000e-01 : f32
    %24 = vector.broadcast %cst_18 : f32 to vector<1x32xf32>
    %25 = arith.mulf %24, %23 : vector<1x32xf32>
    %26 = vector.extract_strided_slice %20 {offsets = [0, 32], sizes = [1, 32], strides = [1, 1]} : vector<1x128xf32> to vector<1x32xf32>
    %cst_19 = arith.constant 1.000000e+00 : f32
    %27 = vector.broadcast %cst_19 : f32 to vector<1x32xf32>
    %28 = arith.addf %27, %26 : vector<1x32xf32>
    %cst_20 = arith.constant 5.000000e-01 : f32
    %29 = vector.broadcast %cst_20 : f32 to vector<1x32xf32>
    %30 = arith.mulf %29, %28 : vector<1x32xf32>
    %31 = vector.extract_strided_slice %20 {offsets = [0, 64], sizes = [1, 32], strides = [1, 1]} : vector<1x128xf32> to vector<1x32xf32>
    %32 = vector.extract_strided_slice %20 {offsets = [0, 96], sizes = [1, 32], strides = [1, 1]} : vector<1x128xf32> to vector<1x32xf32>
    %cst_21 = arith.constant 1.000000e+00 : f32
    %33 = vector.broadcast %cst_21 : f32 to vector<1x32xf32>
    %34 = arith.addf %33, %32 : vector<1x32xf32>
    %cst_22 = arith.constant 5.000000e-01 : f32
    %35 = vector.broadcast %cst_22 : f32 to vector<1x32xf32>
    %36 = arith.mulf %35, %34 : vector<1x32xf32>
    %37 = arith.mulf %30, %12 : vector<1x32xf32>
    %38 = arith.mulf %25, %31 : vector<1x32xf32>
    %39 = arith.addf %37, %38 : vector<1x32xf32>
    %40 = math.tanh %39 : vector<1x32xf32>
    %41 = arith.mulf %36, %40 : vector<1x32xf32>
    %42 = vector.extract_strided_slice %16 {offsets = [1, 0], sizes = [1, 128], strides = [1, 1]} : vector<8x128xf32> to vector<1x128xf32>
    %cst_23 = arith.constant dense<0.000000e+00> : vector<1x128xf32>
    %43 = tpu.matmul %41, %10, %cst_23 {dimension_numbers = #tpu.dot_dimension_numbers<[1], [0], [0], [1], [0, 0, 1, 1], [], []>} : vector<1x32xf32>, vector<32x128xf32>, vector<1x128xf32> -> vector<1x128xf32>
    %44 = arith.addf %42, %43 : vector<1x128xf32>
    %45 = math.tanh %44 : vector<1x128xf32>
    %46 = vector.extract_strided_slice %45 {offsets = [0, 0], sizes = [1, 32], strides = [1, 1]} : vector<1x128xf32> to vector<1x32xf32>
    %cst_24 = arith.constant 1.000000e+00 : f32
    %47 = vector.broadcast %cst_24 : f32 to vector<1x32xf32>
    %48 = arith.addf %47, %46 : vector<1x32xf32>
    %cst_25 = arith.constant 5.000000e-01 : f32
    %49 = vector.broadcast %cst_25 : f32 to vector<1x32xf32>
    %50 = arith.mulf %49, %48 : vector<1x32xf32>
    %51 = vector.extract_strided_slice %45 {offsets = [0, 32], sizes = [1, 32], strides = [1, 1]} : vector<1x128xf32> to vector<1x32xf32>
    %cst_26 = arith.constant 1.000000e+00 : f32
    %52 = vector.broadcast %cst_26 : f32 to vector<1x32xf32>
    %53 = arith.addf %52, %51 : vector<1x32xf32>
    %cst_27 = arith.constant 5.000000e-01 : f32
    %54 = vector.broadcast %cst_27 : f32 to vector<1x32xf32>
    %55 = arith.mulf %54, %53 : vector<1x32xf32>
    %56 = vector.extract_strided_slice %45 {offsets = [0, 64], sizes = [1, 32], strides = [1, 1]} : vector<1x128xf32> to vector<1x32xf32>
    %57 = vector.extract_strided_slice %45 {offsets = [0, 96], sizes = [1, 32], strides = [1, 1]} : vector<1x128xf32> to vector<1x32xf32>
    %cst_28 = arith.constant 1.000000e+00 : f32
    %58 = vector.broadcast %cst_28 : f32 to vector<1x32xf32>
    %59 = arith.addf %58, %57 : vector<1x32xf32>
    %cst_29 = arith.constant 5.000000e-01 : f32
    %60 = vector.broadcast %cst_29 : f32 to vector<1x32xf32>
    %61 = arith.mulf %60, %59 : vector<1x32xf32>
    %62 = arith.mulf %55, %39 : vector<1x32xf32>
    %63 = arith.mulf %50, %56 : vector<1x32xf32>
    %64 = arith.addf %62, %63 : vector<1x32xf32>
    %65 = math.tanh %64 : vector<1x32xf32>
    %66 = arith.mulf %61, %65 : vector<1x32xf32>
    %67 = vector.extract_strided_slice %16 {offsets = [2, 0], sizes = [1, 128], strides = [1, 1]} : vector<8x128xf32> to vector<1x128xf32>
    %cst_30 = arith.constant dense<0.000000e+00> : vector<1x128xf32>
    %68 = tpu.matmul %66, %10, %cst_30 {dimension_numbers = #tpu.dot_dimension_numbers<[1], [0], [0], [1], [0, 0, 1, 1], [], []>} : vector<1x32xf32>, vector<32x128xf32>, vector<1x128xf32> -> vector<1x128xf32>
    %69 = arith.addf %67, %68 : vector<1x128xf32>
    %70 = math.tanh %69 : vector<1x128xf32>
    %71 = vector.extract_strided_slice %70 {offsets = [0, 0], sizes = [1, 32], strides = [1, 1]} : vector<1x128xf32> to vector<1x32xf32>
    %cst_31 = arith.constant 1.000000e+00 : f32
    %72 = vector.broadcast %cst_31 : f32 to vector<1x32xf32>
    %73 = arith.addf %72, %71 : vector<1x32xf32>
    %cst_32 = arith.constant 5.000000e-01 : f32
    %74 = vector.broadcast %cst_32 : f32 to vector<1x32xf32>
    %75 = arith.mulf %74, %73 : vector<1x32xf32>
    %76 = vector.extract_strided_slice %70 {offsets = [0, 32], sizes = [1, 32], strides = [1, 1]} : vector<1x128xf32> to vector<1x32xf32>
    %cst_33 = arith.constant 1.000000e+00 : f32
    %77 = vector.broadcast %cst_33 : f32 to vector<1x32xf32>
    %78 = arith.addf %77, %76 : vector<1x32xf32>
    %cst_34 = arith.constant 5.000000e-01 : f32
    %79 = vector.broadcast %cst_34 : f32 to vector<1x32xf32>
    %80 = arith.mulf %79, %78 : vector<1x32xf32>
    %81 = vector.extract_strided_slice %70 {offsets = [0, 64], sizes = [1, 32], strides = [1, 1]} : vector<1x128xf32> to vector<1x32xf32>
    %82 = vector.extract_strided_slice %70 {offsets = [0, 96], sizes = [1, 32], strides = [1, 1]} : vector<1x128xf32> to vector<1x32xf32>
    %cst_35 = arith.constant 1.000000e+00 : f32
    %83 = vector.broadcast %cst_35 : f32 to vector<1x32xf32>
    %84 = arith.addf %83, %82 : vector<1x32xf32>
    %cst_36 = arith.constant 5.000000e-01 : f32
    %85 = vector.broadcast %cst_36 : f32 to vector<1x32xf32>
    %86 = arith.mulf %85, %84 : vector<1x32xf32>
    %87 = arith.mulf %80, %64 : vector<1x32xf32>
    %88 = arith.mulf %75, %81 : vector<1x32xf32>
    %89 = arith.addf %87, %88 : vector<1x32xf32>
    %90 = math.tanh %89 : vector<1x32xf32>
    %91 = arith.mulf %86, %90 : vector<1x32xf32>
    %92 = vector.extract_strided_slice %16 {offsets = [3, 0], sizes = [1, 128], strides = [1, 1]} : vector<8x128xf32> to vector<1x128xf32>
    %cst_37 = arith.constant dense<0.000000e+00> : vector<1x128xf32>
    %93 = tpu.matmul %91, %10, %cst_37 {dimension_numbers = #tpu.dot_dimension_numbers<[1], [0], [0], [1], [0, 0, 1, 1], [], []>} : vector<1x32xf32>, vector<32x128xf32>, vector<1x128xf32> -> vector<1x128xf32>
    %94 = arith.addf %92, %93 : vector<1x128xf32>
    %95 = math.tanh %94 : vector<1x128xf32>
    %96 = vector.extract_strided_slice %95 {offsets = [0, 0], sizes = [1, 32], strides = [1, 1]} : vector<1x128xf32> to vector<1x32xf32>
    %cst_38 = arith.constant 1.000000e+00 : f32
    %97 = vector.broadcast %cst_38 : f32 to vector<1x32xf32>
    %98 = arith.addf %97, %96 : vector<1x32xf32>
    %cst_39 = arith.constant 5.000000e-01 : f32
    %99 = vector.broadcast %cst_39 : f32 to vector<1x32xf32>
    %100 = arith.mulf %99, %98 : vector<1x32xf32>
    %101 = vector.extract_strided_slice %95 {offsets = [0, 32], sizes = [1, 32], strides = [1, 1]} : vector<1x128xf32> to vector<1x32xf32>
    %cst_40 = arith.constant 1.000000e+00 : f32
    %102 = vector.broadcast %cst_40 : f32 to vector<1x32xf32>
    %103 = arith.addf %102, %101 : vector<1x32xf32>
    %cst_41 = arith.constant 5.000000e-01 : f32
    %104 = vector.broadcast %cst_41 : f32 to vector<1x32xf32>
    %105 = arith.mulf %104, %103 : vector<1x32xf32>
    %106 = vector.extract_strided_slice %95 {offsets = [0, 64], sizes = [1, 32], strides = [1, 1]} : vector<1x128xf32> to vector<1x32xf32>
    %107 = vector.extract_strided_slice %95 {offsets = [0, 96], sizes = [1, 32], strides = [1, 1]} : vector<1x128xf32> to vector<1x32xf32>
    %cst_42 = arith.constant 1.000000e+00 : f32
    %108 = vector.broadcast %cst_42 : f32 to vector<1x32xf32>
    %109 = arith.addf %108, %107 : vector<1x32xf32>
    %cst_43 = arith.constant 5.000000e-01 : f32
    %110 = vector.broadcast %cst_43 : f32 to vector<1x32xf32>
    %111 = arith.mulf %110, %109 : vector<1x32xf32>
    %112 = arith.mulf %105, %89 : vector<1x32xf32>
    %113 = arith.mulf %100, %106 : vector<1x32xf32>
    %114 = arith.addf %112, %113 : vector<1x32xf32>
    %115 = math.tanh %114 : vector<1x32xf32>
    %116 = arith.mulf %111, %115 : vector<1x32xf32>
    %117 = vector.extract_strided_slice %16 {offsets = [4, 0], sizes = [1, 128], strides = [1, 1]} : vector<8x128xf32> to vector<1x128xf32>
    %cst_44 = arith.constant dense<0.000000e+00> : vector<1x128xf32>
    %118 = tpu.matmul %116, %10, %cst_44 {dimension_numbers = #tpu.dot_dimension_numbers<[1], [0], [0], [1], [0, 0, 1, 1], [], []>} : vector<1x32xf32>, vector<32x128xf32>, vector<1x128xf32> -> vector<1x128xf32>
    %119 = arith.addf %117, %118 : vector<1x128xf32>
    %120 = math.tanh %119 : vector<1x128xf32>
    %121 = vector.extract_strided_slice %120 {offsets = [0, 0], sizes = [1, 32], strides = [1, 1]} : vector<1x128xf32> to vector<1x32xf32>
    %cst_45 = arith.constant 1.000000e+00 : f32
    %122 = vector.broadcast %cst_45 : f32 to vector<1x32xf32>
    %123 = arith.addf %122, %121 : vector<1x32xf32>
    %cst_46 = arith.constant 5.000000e-01 : f32
    %124 = vector.broadcast %cst_46 : f32 to vector<1x32xf32>
    %125 = arith.mulf %124, %123 : vector<1x32xf32>
    %126 = vector.extract_strided_slice %120 {offsets = [0, 32], sizes = [1, 32], strides = [1, 1]} : vector<1x128xf32> to vector<1x32xf32>
    %cst_47 = arith.constant 1.000000e+00 : f32
    %127 = vector.broadcast %cst_47 : f32 to vector<1x32xf32>
    %128 = arith.addf %127, %126 : vector<1x32xf32>
    %cst_48 = arith.constant 5.000000e-01 : f32
    %129 = vector.broadcast %cst_48 : f32 to vector<1x32xf32>
    %130 = arith.mulf %129, %128 : vector<1x32xf32>
    %131 = vector.extract_strided_slice %120 {offsets = [0, 64], sizes = [1, 32], strides = [1, 1]} : vector<1x128xf32> to vector<1x32xf32>
    %132 = vector.extract_strided_slice %120 {offsets = [0, 96], sizes = [1, 32], strides = [1, 1]} : vector<1x128xf32> to vector<1x32xf32>
    %cst_49 = arith.constant 1.000000e+00 : f32
    %133 = vector.broadcast %cst_49 : f32 to vector<1x32xf32>
    %134 = arith.addf %133, %132 : vector<1x32xf32>
    %cst_50 = arith.constant 5.000000e-01 : f32
    %135 = vector.broadcast %cst_50 : f32 to vector<1x32xf32>
    %136 = arith.mulf %135, %134 : vector<1x32xf32>
    %137 = arith.mulf %130, %114 : vector<1x32xf32>
    %138 = arith.mulf %125, %131 : vector<1x32xf32>
    %139 = arith.addf %137, %138 : vector<1x32xf32>
    %140 = math.tanh %139 : vector<1x32xf32>
    %141 = arith.mulf %136, %140 : vector<1x32xf32>
    %142 = vector.extract_strided_slice %16 {offsets = [5, 0], sizes = [1, 128], strides = [1, 1]} : vector<8x128xf32> to vector<1x128xf32>
    %cst_51 = arith.constant dense<0.000000e+00> : vector<1x128xf32>
    %143 = tpu.matmul %141, %10, %cst_51 {dimension_numbers = #tpu.dot_dimension_numbers<[1], [0], [0], [1], [0, 0, 1, 1], [], []>} : vector<1x32xf32>, vector<32x128xf32>, vector<1x128xf32> -> vector<1x128xf32>
    %144 = arith.addf %142, %143 : vector<1x128xf32>
    %145 = math.tanh %144 : vector<1x128xf32>
    %146 = vector.extract_strided_slice %145 {offsets = [0, 0], sizes = [1, 32], strides = [1, 1]} : vector<1x128xf32> to vector<1x32xf32>
    %cst_52 = arith.constant 1.000000e+00 : f32
    %147 = vector.broadcast %cst_52 : f32 to vector<1x32xf32>
    %148 = arith.addf %147, %146 : vector<1x32xf32>
    %cst_53 = arith.constant 5.000000e-01 : f32
    %149 = vector.broadcast %cst_53 : f32 to vector<1x32xf32>
    %150 = arith.mulf %149, %148 : vector<1x32xf32>
    %151 = vector.extract_strided_slice %145 {offsets = [0, 32], sizes = [1, 32], strides = [1, 1]} : vector<1x128xf32> to vector<1x32xf32>
    %cst_54 = arith.constant 1.000000e+00 : f32
    %152 = vector.broadcast %cst_54 : f32 to vector<1x32xf32>
    %153 = arith.addf %152, %151 : vector<1x32xf32>
    %cst_55 = arith.constant 5.000000e-01 : f32
    %154 = vector.broadcast %cst_55 : f32 to vector<1x32xf32>
    %155 = arith.mulf %154, %153 : vector<1x32xf32>
    %156 = vector.extract_strided_slice %145 {offsets = [0, 64], sizes = [1, 32], strides = [1, 1]} : vector<1x128xf32> to vector<1x32xf32>
    %157 = vector.extract_strided_slice %145 {offsets = [0, 96], sizes = [1, 32], strides = [1, 1]} : vector<1x128xf32> to vector<1x32xf32>
    %cst_56 = arith.constant 1.000000e+00 : f32
    %158 = vector.broadcast %cst_56 : f32 to vector<1x32xf32>
    %159 = arith.addf %158, %157 : vector<1x32xf32>
    %cst_57 = arith.constant 5.000000e-01 : f32
    %160 = vector.broadcast %cst_57 : f32 to vector<1x32xf32>
    %161 = arith.mulf %160, %159 : vector<1x32xf32>
    %162 = arith.mulf %155, %139 : vector<1x32xf32>
    %163 = arith.mulf %150, %156 : vector<1x32xf32>
    %164 = arith.addf %162, %163 : vector<1x32xf32>
    %165 = math.tanh %164 : vector<1x32xf32>
    %166 = arith.mulf %161, %165 : vector<1x32xf32>
    %167 = vector.extract_strided_slice %16 {offsets = [6, 0], sizes = [1, 128], strides = [1, 1]} : vector<8x128xf32> to vector<1x128xf32>
    %cst_58 = arith.constant dense<0.000000e+00> : vector<1x128xf32>
    %168 = tpu.matmul %166, %10, %cst_58 {dimension_numbers = #tpu.dot_dimension_numbers<[1], [0], [0], [1], [0, 0, 1, 1], [], []>} : vector<1x32xf32>, vector<32x128xf32>, vector<1x128xf32> -> vector<1x128xf32>
    %169 = arith.addf %167, %168 : vector<1x128xf32>
    %170 = math.tanh %169 : vector<1x128xf32>
    %171 = vector.extract_strided_slice %170 {offsets = [0, 0], sizes = [1, 32], strides = [1, 1]} : vector<1x128xf32> to vector<1x32xf32>
    %cst_59 = arith.constant 1.000000e+00 : f32
    %172 = vector.broadcast %cst_59 : f32 to vector<1x32xf32>
    %173 = arith.addf %172, %171 : vector<1x32xf32>
    %cst_60 = arith.constant 5.000000e-01 : f32
    %174 = vector.broadcast %cst_60 : f32 to vector<1x32xf32>
    %175 = arith.mulf %174, %173 : vector<1x32xf32>
    %176 = vector.extract_strided_slice %170 {offsets = [0, 32], sizes = [1, 32], strides = [1, 1]} : vector<1x128xf32> to vector<1x32xf32>
    %cst_61 = arith.constant 1.000000e+00 : f32
    %177 = vector.broadcast %cst_61 : f32 to vector<1x32xf32>
    %178 = arith.addf %177, %176 : vector<1x32xf32>
    %cst_62 = arith.constant 5.000000e-01 : f32
    %179 = vector.broadcast %cst_62 : f32 to vector<1x32xf32>
    %180 = arith.mulf %179, %178 : vector<1x32xf32>
    %181 = vector.extract_strided_slice %170 {offsets = [0, 64], sizes = [1, 32], strides = [1, 1]} : vector<1x128xf32> to vector<1x32xf32>
    %182 = vector.extract_strided_slice %170 {offsets = [0, 96], sizes = [1, 32], strides = [1, 1]} : vector<1x128xf32> to vector<1x32xf32>
    %cst_63 = arith.constant 1.000000e+00 : f32
    %183 = vector.broadcast %cst_63 : f32 to vector<1x32xf32>
    %184 = arith.addf %183, %182 : vector<1x32xf32>
    %cst_64 = arith.constant 5.000000e-01 : f32
    %185 = vector.broadcast %cst_64 : f32 to vector<1x32xf32>
    %186 = arith.mulf %185, %184 : vector<1x32xf32>
    %187 = arith.mulf %180, %164 : vector<1x32xf32>
    %188 = arith.mulf %175, %181 : vector<1x32xf32>
    %189 = arith.addf %187, %188 : vector<1x32xf32>
    %190 = math.tanh %189 : vector<1x32xf32>
    %191 = arith.mulf %186, %190 : vector<1x32xf32>
    %192 = vector.extract_strided_slice %16 {offsets = [7, 0], sizes = [1, 128], strides = [1, 1]} : vector<8x128xf32> to vector<1x128xf32>
    %cst_65 = arith.constant dense<0.000000e+00> : vector<1x128xf32>
    %193 = tpu.matmul %191, %10, %cst_65 {dimension_numbers = #tpu.dot_dimension_numbers<[1], [0], [0], [1], [0, 0, 1, 1], [], []>} : vector<1x32xf32>, vector<32x128xf32>, vector<1x128xf32> -> vector<1x128xf32>
    %194 = arith.addf %192, %193 : vector<1x128xf32>
    %195 = math.tanh %194 : vector<1x128xf32>
    %196 = vector.extract_strided_slice %195 {offsets = [0, 0], sizes = [1, 32], strides = [1, 1]} : vector<1x128xf32> to vector<1x32xf32>
    %cst_66 = arith.constant 1.000000e+00 : f32
    %197 = vector.broadcast %cst_66 : f32 to vector<1x32xf32>
    %198 = arith.addf %197, %196 : vector<1x32xf32>
    %cst_67 = arith.constant 5.000000e-01 : f32
    %199 = vector.broadcast %cst_67 : f32 to vector<1x32xf32>
    %200 = arith.mulf %199, %198 : vector<1x32xf32>
    %201 = vector.extract_strided_slice %195 {offsets = [0, 32], sizes = [1, 32], strides = [1, 1]} : vector<1x128xf32> to vector<1x32xf32>
    %cst_68 = arith.constant 1.000000e+00 : f32
    %202 = vector.broadcast %cst_68 : f32 to vector<1x32xf32>
    %203 = arith.addf %202, %201 : vector<1x32xf32>
    %cst_69 = arith.constant 5.000000e-01 : f32
    %204 = vector.broadcast %cst_69 : f32 to vector<1x32xf32>
    %205 = arith.mulf %204, %203 : vector<1x32xf32>
    %206 = vector.extract_strided_slice %195 {offsets = [0, 64], sizes = [1, 32], strides = [1, 1]} : vector<1x128xf32> to vector<1x32xf32>
    %207 = vector.extract_strided_slice %195 {offsets = [0, 96], sizes = [1, 32], strides = [1, 1]} : vector<1x128xf32> to vector<1x32xf32>
    %cst_70 = arith.constant 1.000000e+00 : f32
    %208 = vector.broadcast %cst_70 : f32 to vector<1x32xf32>
    %209 = arith.addf %208, %207 : vector<1x32xf32>
    %cst_71 = arith.constant 5.000000e-01 : f32
    %210 = vector.broadcast %cst_71 : f32 to vector<1x32xf32>
    %211 = arith.mulf %210, %209 : vector<1x32xf32>
    %212 = arith.mulf %205, %189 : vector<1x32xf32>
    %213 = arith.mulf %200, %206 : vector<1x32xf32>
    %214 = arith.addf %212, %213 : vector<1x32xf32>
    %215 = math.tanh %214 : vector<1x32xf32>
    %216 = arith.mulf %211, %215 : vector<1x32xf32>
    %217 = tpu.concatenate %41, %66, %91, %116, %141, %166, %191, %216 in 0 : vector<1x32xf32>, vector<1x32xf32>, vector<1x32xf32>, vector<1x32xf32>, vector<1x32xf32>, vector<1x32xf32>, vector<1x32xf32>, vector<1x32xf32> -> vector<8x32xf32>
    %218 = arith.index_cast %14 : i32 to index
    %c0_72 = arith.constant 0 : index
    %219 = vector.load %arg11[%218, %c0_72] : memref<8x32xf32, #tpu.memory_space<vmem>>, vector<8x32xf32>
    tpu.vector_store %arg11[%218, %c0_72], %217 {strides = array<i32>} : memref<8x32xf32, #tpu.memory_space<vmem>>, vector<8x32xf32>,
    %c1_i32 = arith.constant 1 : i32
    %c0_73 = arith.constant 0 : index
    %c0_74 = arith.constant 0 : index
    %220 = vector.load %arg8[%c0_73, %c0_74] : memref<1x32xf32, #tpu.memory_space<vmem>>, vector<1x32xf32>
    tpu.vector_store %arg8[%c0_73, %c0_74], %216 {strides = array<i32>} : memref<1x32xf32, #tpu.memory_space<vmem>>, vector<1x32xf32>,
    %c0_75 = arith.constant 0 : index
    %c0_76 = arith.constant 0 : index
    %221 = vector.load %arg9[%c0_75, %c0_76] : memref<1x32xf32, #tpu.memory_space<vmem>>, vector<1x32xf32>
    tpu.vector_store %arg9[%c0_75, %c0_76], %214 {strides = array<i32>} : memref<1x32xf32, #tpu.memory_space<vmem>>, vector<1x32xf32>,
    %c0_77 = arith.constant 0 : index
    %c0_78 = arith.constant 0 : index
    %222 = vector.load %arg11[%c0_77, %c0_78] : memref<8x32xf32, #tpu.memory_space<vmem>>, vector<8x32xf32>
    %c0_79 = arith.constant 0 : index
    %c0_80 = arith.constant 0 : index
    %223 = vector.load %arg5[%c0_79, %c0_80] : memref<32x128xf32, #tpu.memory_space<vmem>>, vector<32x128xf32>
    %cst_81 = arith.constant dense<0.000000e+00> : vector<8x128xf32>
    %224 = tpu.matmul %222, %223, %cst_81 {dimension_numbers = #tpu.dot_dimension_numbers<[1], [0], [0], [1], [0, 0, 1, 1], [], []>} : vector<8x32xf32>, vector<32x128xf32>, vector<8x128xf32> -> vector<8x128xf32>
    %c0_82 = arith.constant 0 : index
    %c0_83 = arith.constant 0 : index
    %225 = vector.load %arg6[%c0_82, %c0_83] : memref<1x128xf32, #tpu.memory_space<vmem>>, vector<1x128xf32>
    %226 = vector.broadcast %225 : vector<1x128xf32> to vector<8x128xf32>
    %227 = arith.addf %224, %226 : vector<8x128xf32>
    %c0_84 = arith.constant 0 : index
    %c0_85 = arith.constant 0 : index
    %228 = vector.load %arg7[%c0_84, %c0_85] : memref<8x128xf32, #tpu.memory_space<vmem>>, vector<8x128xf32>
    tpu.vector_store %arg7[%c0_84, %c0_85], %227 {strides = array<i32>} : memref<8x128xf32, #tpu.memory_space<vmem>>, vector<8x128xf32>,
    return
  }
  func.func @transform_0(%arg0: i32) -> (i32, i32) {
    %c0_i32 = arith.constant 0 : i32
    %c0_i32_0 = arith.constant 0 : i32
    return %arg0, %c0_i32 : i32, i32
  }
  func.func @transform_1(%arg0: i32) -> (i32, i32) {
    %c0_i32 = arith.constant 0 : i32
    %c0_i32_0 = arith.constant 0 : i32
    %c0_i32_1 = arith.constant 0 : i32
    return %c0_i32, %c0_i32_0 : i32, i32
  }
  func.func @transform_2(%arg0: i32) -> (i32, i32) {
    %c0_i32 = arith.constant 0 : i32
    %c0_i32_0 = arith.constant 0 : i32
    %c0_i32_1 = arith.constant 0 : i32
    return %c0_i32, %c0_i32_0 : i32, i32
  }
  func.func @transform_3(%arg0: i32) -> (i32, i32) {
    %c0_i32 = arith.constant 0 : i32
    %c0_i32_0 = arith.constant 0 : i32
    %c0_i32_1 = arith.constant 0 : i32
    return %c0_i32, %c0_i32_0 : i32, i32
  }
  func.func @transform_4(%arg0: i32) -> (i32, i32) {
    %c0_i32 = arith.constant 0 : i32
    %c0_i32_0 = arith.constant 0 : i32
    %c0_i32_1 = arith.constant 0 : i32
    return %c0_i32, %c0_i32_0 : i32, i32
  }
  func.func @transform_5(%arg0: i32) -> (i32, i32) {
    %c0_i32 = arith.constant 0 : i32
    %c0_i32_0 = arith.constant 0 : i32
    %c0_i32_1 = arith.constant 0 : i32
    return %c0_i32, %c0_i32_0 : i32, i32
  }
  func.func @transform_6(%arg0: i32) -> (i32, i32) {
    %c0_i32 = arith.constant 0 : i32
    %c0_i32_0 = arith.constant 0 : i32
    return %arg0, %c0_i32 : i32, i32
  }
}

</mosaic_0001>

<llo_original>
// kernel: lstm_tagger_forward.1
$region0: #{lstm_tagger_forward.1}
  #allocation0 [shape = 'u32[]', space=smem, size = 0x4, offset = 0x4, fixed_abs, tag = 'smem constant byte address 0x4 - core index']
  #allocation1 [shape = 'u32[144,128]{1,0:T(1,128)}', space=vmem, size = 0x12000, scoped, tag = 'internal scratch']
  #allocation2 [shape = 'f32[1,32]{1,0:T(1,128)}', space=vmem, size = 0x200, scoped, tag = 'scratch operand']
  #allocation3 [shape = 'f32[1,32]{1,0:T(1,128)}', space=vmem, size = 0x200, scoped, tag = 'scratch operand']
  #allocation4 [shape = 'f32[8,128]{1,0:T(8,128)}', space=vmem, size = 0x1000, scoped, tag = 'scratch operand']
  #allocation5 [shape = 'f32[8,32]{1,0:T(8,128)}', space=vmem, size = 0x1000, scoped, tag = 'scratch operand']
  %s0 = inlined_call_operand.vmem [shape: f32[8,128], index: 0, kind: input, shape index: {}]
  %s1 = inlined_call_operand.hbm [shape: f32[128,128], index: 1, kind: input, shape index: {}]
  %s2 = inlined_call_operand.hbm [shape: f32[32,128], index: 2, kind: input, shape index: {}]
  %s3 = inlined_call_operand.vmem [shape: f32[1,128], index: 3, kind: input, shape index: {}]
  %s4 = inlined_call_operand.hbm [shape: f32[32,128], index: 4, kind: input, shape index: {}]
  %s5 = inlined_call_operand.vmem [shape: f32[1,128], index: 5, kind: input, shape index: {}]
  %s6 = inlined_call_operand.vmem [shape: f32[8,128], index: 6, kind: output, shape index: {}]
  %s7 = sld [smem:[#allocation0]]
  $region50: #{lstm_tagger_forward.1} parent=0
    _
  %s9 = ssub.s32 1, %s7
  %s10 = scalar_select 0, %s9, %s7
  $region1: #{lstm_tagger_forward.1} parent=0
    #allocation6 [shape = 'u8[65536]{0}', space=vmem, size = 0x10000, scoped, tag = 'input window, operand 1, single buffered']
    #allocation7 [shape = 's32[1]{0}', space=sflag, size = 0x4, scoped, tag = 'scoped memory for lstm_tagger_forward.1']
    #allocation8 [shape = 'u8[16384]{0}', space=vmem, size = 0x4000, scoped, tag = 'input window, operand 2, single buffered']
    #allocation9 [shape = 's32[1]{0}', space=sflag, size = 0x4, scoped, tag = 'scoped memory for lstm_tagger_forward.1']
    #allocation10 [shape = 'u8[16384]{0}', space=vmem, size = 0x4000, scoped, tag = 'input window, operand 4, single buffered']
    %11 = vsyncpa [#allocation7], 0
    %12 = vsyncpa [#allocation9], 0
    // Predicated region
    $region2: #{lstm_tagger_forward.1} parent=1 // pred_check
      _
    $region3: #{lstm_tagger_forward.1} parent=1 // pred_check_branch
      %14 = sbr.rel (0) target = $region5
    $region4: #{lstm_tagger_forward.1} parent=1 // pred_region
      _
    $region5: #{lstm_tagger_forward.1} parent=1 // pred_fallthru
      _
    // Predicated region
    $region6: #{lstm_tagger_forward.1} parent=1 // pred_check
      _
    $region7: #{lstm_tagger_forward.1} parent=1 // pred_check_branch
      %16 = sbr.rel (0) target = $region9
    $region8: #{lstm_tagger_forward.1} parent=1 // pred_region
      %s18 = ssub.s32 2048, 2048
      %19 = vsyncadd [#allocation7], %s18
      %s20 = sshll.u32 [#allocation6], 4
      %s21 = int_to_ptr.vmem [resolvable:$true] %s20
      %26 = dma.hbm_to_vmem [thread:$0]  %s1, 2048, %s21, [#allocation7], 128, 128, 8
    $region9: #{lstm_tagger_forward.1} parent=1 // pred_fallthru
      _
    // Predicated region
    $region10: #{lstm_tagger_forward.1} parent=1 // pred_check
      _
    $region11: #{lstm_tagger_forward.1} parent=1 // pred_check_branch
      %28 = sbr.rel (0) target = $region13
    $region12: #{lstm_tagger_forward.1} parent=1 // pred_region
      %s30 = ssub.s32 512, 512
      %31 = vsyncadd [#allocation9], %s30
      %s32 = sshll.u32 [#allocation8], 4
      %s33 = int_to_ptr.vmem [resolvable:$true] %s32
      %38 = dma.hbm_to_vmem [thread:$0]  %s2, 512, %s33, [#allocation9], 128, 128, 8
    $region13: #{lstm_tagger_forward.1} parent=1 // pred_fallthru
      _
    // Predicated region
    $region14: #{lstm_tagger_forward.1} parent=1 // pred_check
      _
    $region15: #{lstm_tagger_forward.1} parent=1 // pred_check_branch
      %40 = sbr.rel (0) target = $region17
    $region16: #{lstm_tagger_forward.1} parent=1 // pred_region
      _
    $region17: #{lstm_tagger_forward.1} parent=1 // pred_fallthru
      _
    // Predicated region
    $region18: #{lstm_tagger_forward.1} parent=1 // pred_check
      _
    $region19: #{lstm_tagger_forward.1} parent=1 // pred_check_branch
      %42 = sbr.rel (0) target = $region21
    $region20: #{lstm_tagger_forward.1} parent=1 // pred_region
      %s44 = ssub.s32 512, 512
      %45 = vsyncadd [#allocation9], %s44
      %s46 = sshll.u32 [#allocation10], 4
      %s47 = int_to_ptr.vmem [resolvable:$true] %s46
      %52 = dma.hbm_to_vmem [thread:$0]  %s4, 512, %s47, [#allocation9], 128, 128, 8
    $region21: #{lstm_tagger_forward.1} parent=1 // pred_fallthru
      _
    // Predicated region
    $region22: #{lstm_tagger_forward.1} parent=1 // pred_check
      _
    $region23: #{lstm_tagger_forward.1} parent=1 // pred_check_branch
      %54 = sbr.rel (0) target = $region25
    $region24: #{lstm_tagger_forward.1} parent=1 // pred_region
      _
    $region25: #{lstm_tagger_forward.1} parent=1 // pred_fallthru
      _
    // Predicated region
    $region26: #{lstm_tagger_forward.1} parent=1 // pred_check
      _
    $region27: #{lstm_tagger_forward.1} parent=1 // pred_check_branch
      %56 = sbr.rel (0) target = $region29
    $region28: #{lstm_tagger_forward.1} parent=1 // pred_region
      %57 = dma.done [#allocation7], 2048
    $region29: #{lstm_tagger_forward.1} parent=1 // pred_fallthru
      _
    // Predicated region
    $region30: #{lstm_tagger_forward.1} parent=1 // pred_check
      _
    $region31: #{lstm_tagger_forward.1} parent=1 // pred_check_branch
      %59 = sbr.rel (0) target = $region33
    $region32: #{lstm_tagger_forward.1} parent=1 // pred_region
      %60 = dma.done [#allocation9], 512
    $region33: #{lstm_tagger_forward.1} parent=1 // pred_fallthru
      _
    // Predicated region
    $region34: #{lstm_tagger_forward.1} parent=1 // pred_check
      _
    $region35: #{lstm_tagger_forward.1} parent=1 // pred_check_branch
      %62 = sbr.rel (0) target = $region37
    $region36: #{lstm_tagger_forward.1} parent=1 // pred_region
      %63 = dma.done [#allocation9], 512
    $region37: #{lstm_tagger_forward.1} parent=1 // pred_fallthru
      _
    %p64 = scmp.eq.s32.totalorder 0, 0
    // Predicated region
    $region38: #{lstm_tagger_forward.1} parent=1 // pred_check
      %p65 = pneg %p64
    $region39: #{lstm_tagger_forward.1} parent=1 // pred_check_branch
      %67 = sbr.rel (%p65) target = $region41
    $region40: #{lstm_tagger_forward.1} parent=1 // pred_region
      %vm68 = vcmask 253952
      %69 = vst.msk [vmem:[#allocation2] sm:$0x1] %vm68, 0.0
      %70 = vst.msk [vmem:[#allocation3] sm:$0x1] %vm68, 0.0
    $region41: #{lstm_tagger_forward.1} parent=1 // pred_fallthru
      _
    %v71 = vld [vmem:[%s0] sm:$0xff]
    %v72 = vld [vmem:[#allocation6] sm:$0xff]
    %v73 = vld [vmem:[#allocation6 + $0x8] sm:$0xff]
    %v74 = vld [vmem:[#allocation6 + $0x10] sm:$0xff]
    %v75 = vld [vmem:[#allocation6 + $0x18] sm:$0xff]
    %v76 = vld [vmem:[#allocation6 + $0x20] sm:$0xff]
    %v77 = vld [vmem:[#allocation6 + $0x28] sm:$0xff]
    %v78 = vld [vmem:[#allocation6 + $0x30] sm:$0xff]
    %v79 = vld [vmem:[#allocation6 + $0x38] sm:$0xff]
    %v80 = vld [vmem:[#allocation6 + $0x40] sm:$0xff]
    %v81 = vld [vmem:[#allocation6 + $0x48] sm:$0xff]
    %v82 = vld [vmem:[#allocation6 + $0x50] sm:$0xff]
    %v83 = vld [vmem:[#allocation6 + $0x58] sm:$0xff]
    %v84 = vld [vmem:[#allocation6 + $0x60] sm:$0xff]
    %v85 = vld [vmem:[#allocation6 + $0x68] sm:$0xff]
    %v86 = vld [vmem:[#allocation6 + $0x70] sm:$0xff]
    %v87 = vld [vmem:[#allocation6 + $0x78] sm:$0xff]
    %v88 = vld [vmem:[%s3] sm:$0x1]
    %v90 = vlaneseq
    %v91 = vshrl.u32 %v90, 7
    %v92 = vsub.s32 0, %v91
    %v93 = vrot.slane %v88, %v92
    %95 = vmatprep.subr.mxu0 0.0
    %96 = vmatpush1.msra.mxu0 %v87
    %97 = vmatprep.subr.mxu0 0.0
    %98 = vmatpush1.msra.mxu0 %v86
    %99 = vmatprep.subr.mxu0 0.0
    %100 = vmatpush1.msra.mxu0 %v85
    %101 = vmatprep.subr.mxu0 0.0
    %102 = vmatpush1.msra.mxu0 %v84
    %103 = vmatprep.subr.mxu0 0.0
    %104 = vmatpush1.msra.mxu0 %v83
    %105 = vmatprep.subr.mxu0 0.0
    %106 = vmatpush1.msra.mxu0 %v82
    %107 = vmatprep.subr.mxu0 0.0
    %108 = vmatpush1.msra.mxu0 %v81
    %109 = vmatprep.subr.mxu0 0.0
    %110 = vmatpush1.msra.mxu0 %v80
    %111 = vmatprep.subr.mxu0 0.0
    %112 = vmatpush1.msra.mxu0 %v79
    %113 = vmatprep.subr.mxu0 0.0
    %114 = vmatpush1.msra.mxu0 %v78
    %115 = vmatprep.subr.mxu0 0.0
    %116 = vmatpush1.msra.mxu0 %v77
    %117 = vmatprep.subr.mxu0 0.0
    %118 = vmatpush1.msra.mxu0 %v76
    %119 = vmatprep.subr.mxu0 0.0
    %120 = vmatpush1.msra.mxu0 %v75
    %121 = vmatprep.subr.mxu0 0.0
    %122 = vmatpush1.msra.mxu0 %v74
    %123 = vmatprep.subr.mxu0 0.0
    %124 = vmatpush1.msra.mxu0 %v73
    %125 = vmatprep.subr.mxu0 0.0
    %126 = vmatpush1.msra.mxu0 %v72
    %127 = vmatprep.subr.mxu0 0.0
    %128 = vmatpush2.msra.mxu0 0.0
    %129 = vmatprep.subr.mxu0 0.0
    %130 = vmatpush2.msra.mxu0 0.0
    %131 = vmatprep.subr.mxu0 0.0
    %132 = vmatpush2.msra.mxu0 0.0
    %133 = vmatprep.subr.mxu0 0.0
    %134 = vmatpush2.msra.mxu0 0.0
    %135 = vmatprep.subr.mxu0 0.0
    %136 = vmatpush2.msra.mxu0 0.0
    %137 = vmatprep.subr.mxu0 0.0
    %138 = vmatpush2.msra.mxu0 0.0
    %139 = vmatprep.subr.mxu0 0.0
    %140 = vmatpush2.msra.mxu0 0.0
    %141 = vmatprep.subr.mxu0 0.0
    %142 = vmatpush2.msra.mxu0 0.0
    %143 = vmatprep.subr.mxu0 0.0
    %144 = vmatpush2.msra.mxu0 0.0
    %145 = vmatprep.subr.mxu0 0.0
    %146 = vmatpush2.msra.mxu0 0.0
    %147 = vmatprep.subr.mxu0 0.0
    %148 = vmatpush2.msra.mxu0 0.0
    %149 = vmatprep.subr.mxu0 0.0
    %150 = vmatpush2.msra.mxu0 0.0
    %151 = vmatprep.subr.mxu0 0.0
    %152 = vmatpush2.msra.mxu0 0.0
    %153 = vmatprep.subr.mxu0 0.0
    %154 = vmatpush2.msra.mxu0 0.0
    %155 = vmatprep.subr.mxu0 0.0
    %156 = vmatpush2.msra.mxu0 0.0
    %157 = vmatprep.subr.mxu0 0.0
    %158 = vmatpush2.msra.mxu0 0.0
    %159 = vmatprep.mubr.f32.mxu0 0.0
    %160 = vmatmul.mubr.f32.gmra.mxu0 %v71
    %v161 = vpop.f32.mrf.mxu0
    %v162 = vadd.f32 %v93, %v161
    %v163 = vpop.f32.mrf.mxu0
    %164 = vdwg.mxu0
    %165 = vst [vmem:[#allocation4] sm:$0xff] %v162
    %v166 = vld [vmem:[#allocation8] sm:$0xff]
    %v167 = vld [vmem:[#allocation8 + $0x8] sm:$0xff]
    %v168 = vld [vmem:[#allocation8 + $0x10] sm:$0xff]
    %v169 = vld [vmem:[#allocation8 + $0x18] sm:$0xff]
    %v170 = vld [vmem:[#allocation2] sm:$0x1]
    %v171 = vld [vmem:[#allocation3] sm:$0x1]
    %v172 = vld [vmem:[#allocation4] sm:$0xff]
    %vm173 = vcmask 261120
    %v175 = vsel %vm173, %v170, 0
    %177 = vmatprep.subr.mxu0 0.0
    %178 = vmatpush1.msra.mxu0 0.0
    %179 = vmatprep.subr.mxu0 0.0
    %180 = vmatpush1.msra.mxu0 0.0
    %181 = vmatprep.subr.mxu0 0.0
    %182 = vmatpush1.msra.mxu0 0.0
    %183 = vmatprep.subr.mxu0 0.0
    %184 = vmatpush1.msra.mxu0 0.0
    %185 = vmatprep.subr.mxu0 0.0
    %186 = vmatpush1.msra.mxu0 0.0
    %187 = vmatprep.subr.mxu0 0.0
    %188 = vmatpush1.msra.mxu0 0.0
    %189 = vmatprep.subr.mxu0 0.0
    %190 = vmatpush1.msra.mxu0 0.0
    %191 = vmatprep.subr.mxu0 0.0
    %192 = vmatpush1.msra.mxu0 0.0
    %193 = vmatprep.subr.mxu0 0.0
    %194 = vmatpush1.msra.mxu0 0.0
    %195 = vmatprep.subr.mxu0 0.0
    %196 = vmatpush1.msra.mxu0 0.0
    %197 = vmatprep.subr.mxu0 0.0
    %198 = vmatpush1.msra.mxu0 0.0
    %199 = vmatprep.subr.mxu0 0.0
    %200 = vmatpush1.msra.mxu0 0.0
    %201 = vmatprep.subr.mxu0 0.0
    %202 = vmatpush1.msra.mxu0 %v169
    %203 = vmatprep.subr.mxu0 0.0
    %204 = vmatpush1.msra.mxu0 %v168
    %205 = vmatprep.subr.mxu0 0.0
    %206 = vmatpush1.msra.mxu0 %v167
    %207 = vmatprep.subr.mxu0 0.0
    %208 = vmatpush1.msra.mxu0 %v166
    %209 = vmatprep.subr.mxu0 0.0
    %210 = vmatpush2.msra.mxu0 0.0
    %211 = vmatprep.subr.mxu0 0.0
    %212 = vmatpush2.msra.mxu0 0.0
    %213 = vmatprep.subr.mxu0 0.0
    %214 = vmatpush2.msra.mxu0 0.0
    %215 = vmatprep.subr.mxu0 0.0
    %216 = vmatpush2.msra.mxu0 0.0
    %217 = vmatprep.subr.mxu0 0.0
    %218 = vmatpush2.msra.mxu0 0.0
    %219 = vmatprep.subr.mxu0 0.0
    %220 = vmatpush2.msra.mxu0 0.0
    %221 = vmatprep.subr.mxu0 0.0
    %222 = vmatpush2.msra.mxu0 0.0
    %223 = vmatprep.subr.mxu0 0.0
    %224 = vmatpush2.msra.mxu0 0.0
    %225 = vmatprep.subr.mxu0 0.0
    %226 = vmatpush2.msra.mxu0 0.0
    %227 = vmatprep.subr.mxu0 0.0
    %228 = vmatpush2.msra.mxu0 0.0
    %229 = vmatprep.subr.mxu0 0.0
    %230 = vmatpush2.msra.mxu0 0.0
    %231 = vmatprep.subr.mxu0 0.0
    %232 = vmatpush2.msra.mxu0 0.0
    %233 = vmatprep.subr.mxu0 0.0
    %234 = vmatpush2.msra.mxu0 0.0
    %235 = vmatprep.subr.mxu0 0.0
    %236 = vmatpush2.msra.mxu0 0.0
    %237 = vmatprep.subr.mxu0 0.0
    %238 = vmatpush2.msra.mxu0 0.0
    %239 = vmatprep.subr.mxu0 0.0
    %240 = vmatpush2.msra.mxu0 0.0
    %241 = vmatprep.mubr.f32.mxu0 0.0
    %242 = vmatmul.mubr.f32.gmra.mxu0 %v175
    %v243 = vpop.f32.mrf.mxu0
    %v244 = vadd.f32 0.0, %v243
    %v245 = vpop.f32.mrf.mxu0
    %246 = vdwg.mxu0
    %v247 = vadd.f32 %v172, %v244
    %v248 = vtanh.pop %v247
    %v249 = vadd.f32 %v248, 1.0
    %v250 = vmul.f32 %v249, 0.5
    %v252 = vlaneseq
    %v253 = vshrl.u32 %v252, 7
    %v254 = vsub.s32 0, %v253
    %v255 = vrot.slane %v171, %v254
    %256 = vrot.lane.b32.xlu0 %v255, 32
    %v257 = vpop.permute.xlu0 %256
    %v259 = vmul.f32 %v250, %v257
    %261 = vrot.lane.b32.xlu0 %v248, 64
    %v262 = vpop.permute.xlu0 %261
    %v264 = vmul.f32 %v250, %v262
    %266 = vrot.lane.b32.xlu0 %v264, 32
    %v267 = vpop.permute.xlu0 %266
    %v269 = vadd.f32 %v259, %v267
    %v270 = vtanh.pop %v269
    %272 = vrot.lane.b32.xlu0 %v270, 64
    %v273 = vpop.permute.xlu0 %272
    %v275 = vmul.f32 %v250, %v273
    %277 = vrot.lane.b32.xlu0 %v275, 32
    %v278 = vpop.permute.xlu0 %277
    %v279 = vsel %vm173, %v278, 0
    %281 = vmatprep.subr.mxu0 0.0
    %282 = vmatpush1.msra.mxu0 0.0
    %283 = vmatprep.subr.mxu0 0.0
    %284 = vmatpush1.msra.mxu0 0.0
    %285 = vmatprep.subr.mxu0 0.0
    %286 = vmatpush1.msra.mxu0 0.0
    %287 = vmatprep.subr.mxu0 0.0
    %288 = vmatpush1.msra.mxu0 0.0
    %289 = vmatprep.subr.mxu0 0.0
    %290 = vmatpush1.msra.mxu0 0.0
    %291 = vmatprep.subr.mxu0 0.0
    %292 = vmatpush1.msra.mxu0 0.0
    %293 = vmatprep.subr.mxu0 0.0
    %294 = vmatpush1.msra.mxu0 0.0
    %295 = vmatprep.subr.mxu0 0.0
    %296 = vmatpush1.msra.mxu0 0.0
    %297 = vmatprep.subr.mxu0 0.0
    %298 = vmatpush1.msra.mxu0 0.0
    %299 = vmatprep.subr.mxu0 0.0
    %300 = vmatpush1.msra.mxu0 0.0
    %301 = vmatprep.subr.mxu0 0.0
    %302 = vmatpush1.msra.mxu0 0.0
    %303 = vmatprep.subr.mxu0 0.0
    %304 = vmatpush1.msra.mxu0 0.0
    %305 = vmatprep.subr.mxu0 0.0
    %306 = vmatpush1.msra.mxu0 %v169
    %307 = vmatprep.subr.mxu0 0.0
    %308 = vmatpush1.msra.mxu0 %v168
    %309 = vmatprep.subr.mxu0 0.0
    %310 = vmatpush1.msra.mxu0 %v167
    %311 = vmatprep.subr.mxu0 0.0
    %312 = vmatpush1.msra.mxu0 %v166
    %313 = vmatprep.subr.mxu0 0.0
    %314 = vmatpush2.msra.mxu0 0.0
    %315 = vmatprep.subr.mxu0 0.0
    %316 = vmatpush2.msra.mxu0 0.0
    %317 = vmatprep.subr.mxu0 0.0
    %318 = vmatpush2.msra.mxu0 0.0
    %319 = vmatprep.subr.mxu0 0.0
    %320 = vmatpush2.msra.mxu0 0.0
    %321 = vmatprep.subr.mxu0 0.0
    %322 = vmatpush2.msra.mxu0 0.0
    %323 = vmatprep.subr.mxu0 0.0
    %324 = vmatpush2.msra.mxu0 0.0
    %325 = vmatprep.subr.mxu0 0.0
    %326 = vmatpush2.msra.mxu0 0.0
    %327 = vmatprep.subr.mxu0 0.0
    %328 = vmatpush2.msra.mxu0 0.0
    %329 = vmatprep.subr.mxu0 0.0
    %330 = vmatpush2.msra.mxu0 0.0
    %331 = vmatprep.subr.mxu0 0.0
    %332 = vmatpush2.msra.mxu0 0.0
    %333 = vmatprep.subr.mxu0 0.0
    %334 = vmatpush2.msra.mxu0 0.0
    %335 = vmatprep.subr.mxu0 0.0
    %336 = vmatpush2.msra.mxu0 0.0
    %337 = vmatprep.subr.mxu0 0.0
    %338 = vmatpush2.msra.mxu0 0.0
    %339 = vmatprep.subr.mxu0 0.0
    %340 = vmatpush2.msra.mxu0 0.0
    %341 = vmatprep.subr.mxu0 0.0
    %342 = vmatpush2.msra.mxu0 0.0
    %343 = vmatprep.subr.mxu0 0.0
    %344 = vmatpush2.msra.mxu0 0.0
    %345 = vmatprep.mubr.f32.mxu0 0.0
    %346 = vmatmul.mubr.f32.gmra.mxu0 %v279
    %v347 = vpop.f32.mrf.mxu0
    %v348 = vadd.f32 0.0, %v347
    %v349 = vpop.f32.mrf.mxu0
    %350 = vdwg.mxu0
    %v352 = vrot.slane %v348, 7
    %v354 = vadd.f32 %v172, %v352
    %v355 = vtanh.pop %v354
    %v356 = vadd.f32 %v355, 1.0
    %v357 = vmul.f32 %v356, 0.5
    %v359 = vrot.slane %v269, 7
    %v361 = vmul.f32 %v357, %v359
    %363 = vrot.lane.b32.xlu0 %v355, 64
    %v364 = vpop.permute.xlu0 %363
    %v366 = vmul.f32 %v357, %v364
    %368 = vrot.lane.b32.xlu0 %v366, 32
    %v369 = vpop.permute.xlu0 %368
    %v371 = vadd.f32 %v361, %v369
    %v372 = vtanh.pop %v371
    %374 = vrot.lane.b32.xlu0 %v372, 64
    %v375 = vpop.permute.xlu0 %374
    %v377 = vmul.f32 %v357, %v375
    %v379 = vrot.slane %v377, 1
    %380 = vrot.lane.b32.xlu0 %v379, 32
    %v381 = vpop.permute.xlu0 %380
    %v382 = vsel %vm173, %v381, 0
    %384 = vmatprep.subr.mxu0 0.0
    %385 = vmatpush1.msra.mxu0 0.0
    %386 = vmatprep.subr.mxu0 0.0
    %387 = vmatpush1.msra.mxu0 0.0
    %388 = vmatprep.subr.mxu0 0.0
    %389 = vmatpush1.msra.mxu0 0.0
    %390 = vmatprep.subr.mxu0 0.0
    %391 = vmatpush1.msra.mxu0 0.0
    %392 = vmatprep.subr.mxu0 0.0
    %393 = vmatpush1.msra.mxu0 0.0
    %394 = vmatprep.subr.mxu0 0.0
    %395 = vmatpush1.msra.mxu0 0.0
    %396 = vmatprep.subr.mxu0 0.0
    %397 = vmatpush1.msra.mxu0 0.0
    %398 = vmatprep.subr.mxu0 0.0
    %399 = vmatpush1.msra.mxu0 0.0
    %400 = vmatprep.subr.mxu0 0.0
    %401 = vmatpush1.msra.mxu0 0.0
    %402 = vmatprep.subr.mxu0 0.0
    %403 = vmatpush1.msra.mxu0 0.0
    %404 = vmatprep.subr.mxu0 0.0
    %405 = vmatpush1.msra.mxu0 0.0
    %406 = vmatprep.subr.mxu0 0.0
    %407 = vmatpush1.msra.mxu0 0.0
    %408 = vmatprep.subr.mxu0 0.0
    %409 = vmatpush1.msra.mxu0 %v169
    %410 = vmatprep.subr.mxu0 0.0
    %411 = vmatpush1.msra.mxu0 %v168
    %412 = vmatprep.subr.mxu0 0.0
    %413 = vmatpush1.msra.mxu0 %v167
    %414 = vmatprep.subr.mxu0 0.0
    %415 = vmatpush1.msra.mxu0 %v166
    %416 = vmatprep.subr.mxu0 0.0
    %417 = vmatpush2.msra.mxu0 0.0
    %418 = vmatprep.subr.mxu0 0.0
    %419 = vmatpush2.msra.mxu0 0.0
    %420 = vmatprep.subr.mxu0 0.0
    %421 = vmatpush2.msra.mxu0 0.0
    %422 = vmatprep.subr.mxu0 0.0
    %423 = vmatpush2.msra.mxu0 0.0
    %424 = vmatprep.subr.mxu0 0.0
    %425 = vmatpush2.msra.mxu0 0.0
    %426 = vmatprep.subr.mxu0 0.0
    %427 = vmatpush2.msra.mxu0 0.0
    %428 = vmatprep.subr.mxu0 0.0
    %429 = vmatpush2.msra.mxu0 0.0
    %430 = vmatprep.subr.mxu0 0.0
    %431 = vmatpush2.msra.mxu0 0.0
    %432 = vmatprep.subr.mxu0 0.0
    %433 = vmatpush2.msra.mxu0 0.0
    %434 = vmatprep.subr.mxu0 0.0
    %435 = vmatpush2.msra.mxu0 0.0
    %436 = vmatprep.subr.mxu0 0.0
    %437 = vmatpush2.msra.mxu0 0.0
    %438 = vmatprep.subr.mxu0 0.0
    %439 = vmatpush2.msra.mxu0 0.0
    %440 = vmatprep.subr.mxu0 0.0
    %441 = vmatpush2.msra.mxu0 0.0
    %442 = vmatprep.subr.mxu0 0.0
    %443 = vmatpush2.msra.mxu0 0.0
    %444 = vmatprep.subr.mxu0 0.0
    %445 = vmatpush2.msra.mxu0 0.0
    %446 = vmatprep.subr.mxu0 0.0
    %447 = vmatpush2.msra.mxu0 0.0
    %448 = vmatprep.mubr.f32.mxu0 0.0
    %449 = vmatmul.mubr.f32.gmra.mxu0 %v382
    %v450 = vpop.f32.mrf.mxu0
    %v451 = vadd.f32 0.0, %v450
    %v452 = vpop.f32.mrf.mxu0
    %453 = vdwg.mxu0
    %v455 = vrot.slane %v451, 6
    %v457 = vadd.f32 %v172, %v455
    %v458 = vtanh.pop %v457
    %v459 = vadd.f32 %v458, 1.0
    %v460 = vmul.f32 %v459, 0.5
    %v462 = vrot.slane %v371, 7
    %v464 = vmul.f32 %v460, %v462
    %466 = vrot.lane.b32.xlu0 %v458, 64
    %v467 = vpop.permute.xlu0 %466
    %v469 = vmul.f32 %v460, %v467
    %471 = vrot.lane.b32.xlu0 %v469, 32
    %v472 = vpop.permute.xlu0 %471
    %v474 = vadd.f32 %v464, %v472
    %v475 = vtanh.pop %v474
    %477 = vrot.lane.b32.xlu0 %v475, 64
    %v478 = vpop.permute.xlu0 %477
    %v480 = vmul.f32 %v460, %v478
    %v482 = vrot.slane %v480, 2
    %483 = vrot.lane.b32.xlu0 %v482, 32
    %v484 = vpop.permute.xlu0 %483
    %v485 = vsel %vm173, %v484, 0
    %487 = vmatprep.subr.mxu0 0.0
    %488 = vmatpush1.msra.mxu0 0.0
    %489 = vmatprep.subr.mxu0 0.0
    %490 = vmatpush1.msra.mxu0 0.0
    %491 = vmatprep.subr.mxu0 0.0
    %492 = vmatpush1.msra.mxu0 0.0
    %493 = vmatprep.subr.mxu0 0.0
    %494 = vmatpush1.msra.mxu0 0.0
    %495 = vmatprep.subr.mxu0 0.0
    %496 = vmatpush1.msra.mxu0 0.0
    %497 = vmatprep.subr.mxu0 0.0
    %498 = vmatpush1.msra.mxu0 0.0
    %499 = vmatprep.subr.mxu0 0.0
    %500 = vmatpush1.msra.mxu0 0.0
    %501 = vmatprep.subr.mxu0 0.0
    %502 = vmatpush1.msra.mxu0 0.0
    %503 = vmatprep.subr.mxu0 0.0
    %504 = vmatpush1.msra.mxu0 0.0
    %505 = vmatprep.subr.mxu0 0.0
    %506 = vmatpush1.msra.mxu0 0.0
    %507 = vmatprep.subr.mxu0 0.0
    %508 = vmatpush1.msra.mxu0 0.0
    %509 = vmatprep.subr.mxu0 0.0
    %510 = vmatpush1.msra.mxu0 0.0
    %511 = vmatprep.subr.mxu0 0.0
    %512 = vmatpush1.msra.mxu0 %v169
    %513 = vmatprep.subr.mxu0 0.0
    %514 = vmatpush1.msra.mxu0 %v168
    %515 = vmatprep.subr.mxu0 0.0
    %516 = vmatpush1.msra.mxu0 %v167
    %517 = vmatprep.subr.mxu0 0.0
    %518 = vmatpush1.msra.mxu0 %v166
    %519 = vmatprep.subr.mxu0 0.0
    %520 = vmatpush2.msra.mxu0 0.0
    %521 = vmatprep.subr.mxu0 0.0
    %522 = vmatpush2.msra.mxu0 0.0
    %523 = vmatprep.subr.mxu0 0.0
    %524 = vmatpush2.msra.mxu0 0.0
    %525 = vmatprep.subr.mxu0 0.0
    %526 = vmatpush2.msra.mxu0 0.0
    %527 = vmatprep.subr.mxu0 0.0
    %528 = vmatpush2.msra.mxu0 0.0
    %529 = vmatprep.subr.mxu0 0.0
    %530 = vmatpush2.msra.mxu0 0.0
    %531 = vmatprep.subr.mxu0 0.0
    %532 = vmatpush2.msra.mxu0 0.0
    %533 = vmatprep.subr.mxu0 0.0
    %534 = vmatpush2.msra.mxu0 0.0
    %535 = vmatprep.subr.mxu0 0.0
    %536 = vmatpush2.msra.mxu0 0.0
    %537 = vmatprep.subr.mxu0 0.0
    %538 = vmatpush2.msra.mxu0 0.0
    %539 = vmatprep.subr.mxu0 0.0
    %540 = vmatpush2.msra.mxu0 0.0
    %541 = vmatprep.subr.mxu0 0.0
    %542 = vmatpush2.msra.mxu0 0.0
    %543 = vmatprep.subr.mxu0 0.0
    %544 = vmatpush2.msra.mxu0 0.0
    %545 = vmatprep.subr.mxu0 0.0
    %546 = vmatpush2.msra.mxu0 0.0
    %547 = vmatprep.subr.mxu0 0.0
    %548 = vmatpush2.msra.mxu0 0.0
    %549 = vmatprep.subr.mxu0 0.0
    %550 = vmatpush2.msra.mxu0 0.0
    %551 = vmatprep.mubr.f32.mxu0 0.0
    %552 = vmatmul.mubr.f32.gmra.mxu0 %v485
    %v553 = vpop.f32.mrf.mxu0
    %v554 = vadd.f32 0.0, %v553
    %v555 = vpop.f32.mrf.mxu0
    %556 = vdwg.mxu0
    %v558 = vrot.slane %v554, 5
    %v560 = vadd.f32 %v172, %v558
    %v561 = vtanh.pop %v560
    %v562 = vadd.f32 %v561, 1.0
    %v563 = vmul.f32 %v562, 0.5
    %v565 = vrot.slane %v474, 7
    %v567 = vmul.f32 %v563, %v565
    %569 = vrot.lane.b32.xlu0 %v561, 64
    %v570 = vpop.permute.xlu0 %569
    %v572 = vmul.f32 %v563, %v570
    %574 = vrot.lane.b32.xlu0 %v572, 32
    %v575 = vpop.permute.xlu0 %574
    %v577 = vadd.f32 %v567, %v575
    %v578 = vtanh.pop %v577
    %580 = vrot.lane.b32.xlu0 %v578, 64
    %v581 = vpop.permute.xlu0 %580
    %v583 = vmul.f32 %v563, %v581
    %v585 = vrot.slane %v583, 3
    %586 = vrot.lane.b32.xlu0 %v585, 32
    %v587 = vpop.permute.xlu0 %586
    %v588 = vsel %vm173, %v587, 0
    %590 = vmatprep.subr.mxu0 0.0
    %591 = vmatpush1.msra.mxu0 0.0
    %592 = vmatprep.subr.mxu0 0.0
    %593 = vmatpush1.msra.mxu0 0.0
    %594 = vmatprep.subr.mxu0 0.0
    %595 = vmatpush1.msra.mxu0 0.0
    %596 = vmatprep.subr.mxu0 0.0
    %597 = vmatpush1.msra.mxu0 0.0
    %598 = vmatprep.subr.mxu0 0.0
    %599 = vmatpush1.msra.mxu0 0.0
    %600 = vmatprep.subr.mxu0 0.0
    %601 = vmatpush1.msra.mxu0 0.0
    %602 = vmatprep.subr.mxu0 0.0
    %603 = vmatpush1.msra.mxu0 0.0
    %604 = vmatprep.subr.mxu0 0.0
    %605 = vmatpush1.msra.mxu0 0.0
    %606 = vmatprep.subr.mxu0 0.0
    %607 = vmatpush1.msra.mxu0 0.0
    %608 = vmatprep.subr.mxu0 0.0
    %609 = vmatpush1.msra.mxu0 0.0
    %610 = vmatprep.subr.mxu0 0.0
    %611 = vmatpush1.msra.mxu0 0.0
    %612 = vmatprep.subr.mxu0 0.0
    %613 = vmatpush1.msra.mxu0 0.0
    %614 = vmatprep.subr.mxu0 0.0
    %615 = vmatpush1.msra.mxu0 %v169
    %616 = vmatprep.subr.mxu0 0.0
    %617 = vmatpush1.msra.mxu0 %v168
    %618 = vmatprep.subr.mxu0 0.0
    %619 = vmatpush1.msra.mxu0 %v167
    %620 = vmatprep.subr.mxu0 0.0
    %621 = vmatpush1.msra.mxu0 %v166
    %622 = vmatprep.subr.mxu0 0.0
    %623 = vmatpush2.msra.mxu0 0.0
    %624 = vmatprep.subr.mxu0 0.0
    %625 = vmatpush2.msra.mxu0 0.0
    %626 = vmatprep.subr.mxu0 0.0
    %627 = vmatpush2.msra.mxu0 0.0
    %628 = vmatprep.subr.mxu0 0.0
    %629 = vmatpush2.msra.mxu0 0.0
    %630 = vmatprep.subr.mxu0 0.0
    %631 = vmatpush2.msra.mxu0 0.0
    %632 = vmatprep.subr.mxu0 0.0
    %633 = vmatpush2.msra.mxu0 0.0
    %634 = vmatprep.subr.mxu0 0.0
    %635 = vmatpush2.msra.mxu0 0.0
    %636 = vmatprep.subr.mxu0 0.0
    %637 = vmatpush2.msra.mxu0 0.0
    %638 = vmatprep.subr.mxu0 0.0
    %639 = vmatpush2.msra.mxu0 0.0
    %640 = vmatprep.subr.mxu0 0.0
    %641 = vmatpush2.msra.mxu0 0.0
    %642 = vmatprep.subr.mxu0 0.0
    %643 = vmatpush2.msra.mxu0 0.0
    %644 = vmatprep.subr.mxu0 0.0
    %645 = vmatpush2.msra.mxu0 0.0
    %646 = vmatprep.subr.mxu0 0.0
    %647 = vmatpush2.msra.mxu0 0.0
    %648 = vmatprep.subr.mxu0 0.0
    %649 = vmatpush2.msra.mxu0 0.0
    %650 = vmatprep.subr.mxu0 0.0
    %651 = vmatpush2.msra.mxu0 0.0
    %652 = vmatprep.subr.mxu0 0.0
    %653 = vmatpush2.msra.mxu0 0.0
    %654 = vmatprep.mubr.f32.mxu0 0.0
    %655 = vmatmul.mubr.f32.gmra.mxu0 %v588
    %v656 = vpop.f32.mrf.mxu0
    %v657 = vadd.f32 0.0, %v656
    %v658 = vpop.f32.mrf.mxu0
    %659 = vdwg.mxu0
    %v661 = vrot.slane %v657, 4
    %v663 = vadd.f32 %v172, %v661
    %v664 = vtanh.pop %v663
    %v665 = vadd.f32 %v664, 1.0
    %v666 = vmul.f32 %v665, 0.5
    %v668 = vrot.slane %v577, 7
    %v670 = vmul.f32 %v666, %v668
    %672 = vrot.lane.b32.xlu0 %v664, 64
    %v673 = vpop.permute.xlu0 %672
    %v675 = vmul.f32 %v666, %v673
    %677 = vrot.lane.b32.xlu0 %v675, 32
    %v678 = vpop.permute.xlu0 %677
    %v680 = vadd.f32 %v670, %v678
    %v681 = vtanh.pop %v680
    %683 = vrot.lane.b32.xlu0 %v681, 64
    %v684 = vpop.permute.xlu0 %683
    %v686 = vmul.f32 %v666, %v684
    %v688 = vrot.slane %v686, 4
    %689 = vrot.lane.b32.xlu0 %v688, 32
    %v690 = vpop.permute.xlu0 %689
    %v691 = vsel %vm173, %v690, 0
    %693 = vmatprep.subr.mxu0 0.0
    %694 = vmatpush1.msra.mxu0 0.0
    %695 = vmatprep.subr.mxu0 0.0
    %696 = vmatpush1.msra.mxu0 0.0
    %697 = vmatprep.subr.mxu0 0.0
    %698 = vmatpush1.msra.mxu0 0.0
    %699 = vmatprep.subr.mxu0 0.0
    %700 = vmatpush1.msra.mxu0 0.0
    %701 = vmatprep.subr.mxu0 0.0
    %702 = vmatpush1.msra.mxu0 0.0
    %703 = vmatprep.subr.mxu0 0.0
    %704 = vmatpush1.msra.mxu0 0.0
    %705 = vmatprep.subr.mxu0 0.0
    %706 = vmatpush1.msra.mxu0 0.0
    %707 = vmatprep.subr.mxu0 0.0
    %708 = vmatpush1.msra.mxu0 0.0
    %709 = vmatprep.subr.mxu0 0.0
    %710 = vmatpush1.msra.mxu0 0.0
    %711 = vmatprep.subr.mxu0 0.0
    %712 = vmatpush1.msra.mxu0 0.0
    %713 = vmatprep.subr.mxu0 0.0
    %714 = vmatpush1.msra.mxu0 0.0
    %715 = vmatprep.subr.mxu0 0.0
    %716 = vmatpush1.msra.mxu0 0.0
    %717 = vmatprep.subr.mxu0 0.0
    %718 = vmatpush1.msra.mxu0 %v169
    %719 = vmatprep.subr.mxu0 0.0
    %720 = vmatpush1.msra.mxu0 %v168
    %721 = vmatprep.subr.mxu0 0.0
    %722 = vmatpush1.msra.mxu0 %v167
    %723 = vmatprep.subr.mxu0 0.0
    %724 = vmatpush1.msra.mxu0 %v166
    %725 = vmatprep.subr.mxu0 0.0
    %726 = vmatpush2.msra.mxu0 0.0
    %727 = vmatprep.subr.mxu0 0.0
    %728 = vmatpush2.msra.mxu0 0.0
    %729 = vmatprep.subr.mxu0 0.0
    %730 = vmatpush2.msra.mxu0 0.0
    %731 = vmatprep.subr.mxu0 0.0
    %732 = vmatpush2.msra.mxu0 0.0
    %733 = vmatprep.subr.mxu0 0.0
    %734 = vmatpush2.msra.mxu0 0.0
    %735 = vmatprep.subr.mxu0 0.0
    %736 = vmatpush2.msra.mxu0 0.0
    %737 = vmatprep.subr.mxu0 0.0
    %738 = vmatpush2.msra.mxu0 0.0
    %739 = vmatprep.subr.mxu0 0.0
    %740 = vmatpush2.msra.mxu0 0.0
    %741 = vmatprep.subr.mxu0 0.0
    %742 = vmatpush2.msra.mxu0 0.0
    %743 = vmatprep.subr.mxu0 0.0
    %744 = vmatpush2.msra.mxu0 0.0
    %745 = vmatprep.subr.mxu0 0.0
    %746 = vmatpush2.msra.mxu0 0.0
    %747 = vmatprep.subr.mxu0 0.0
    %748 = vmatpush2.msra.mxu0 0.0
    %749 = vmatprep.subr.mxu0 0.0
    %750 = vmatpush2.msra.mxu0 0.0
    %751 = vmatprep.subr.mxu0 0.0
    %752 = vmatpush2.msra.mxu0 0.0
    %753 = vmatprep.subr.mxu0 0.0
    %754 = vmatpush2.msra.mxu0 0.0
    %755 = vmatprep.subr.mxu0 0.0
    %756 = vmatpush2.msra.mxu0 0.0
    %757 = vmatprep.mubr.f32.mxu0 0.0
    %758 = vmatmul.mubr.f32.gmra.mxu0 %v691
    %v759 = vpop.f32.mrf.mxu0
    %v760 = vadd.f32 0.0, %v759
    %v761 = vpop.f32.mrf.mxu0
    %762 = vdwg.mxu0
    %v764 = vrot.slane %v760, 3
    %v766 = vadd.f32 %v172, %v764
    %v767 = vtanh.pop %v766
    %v768 = vadd.f32 %v767, 1.0
    %v769 = vmul.f32 %v768, 0.5
    %v771 = vrot.slane %v680, 7
    %v773 = vmul.f32 %v769, %v771
    %775 = vrot.lane.b32.xlu0 %v767, 64
    %v776 = vpop.permute.xlu0 %775
    %v778 = vmul.f32 %v769, %v776
    %780 = vrot.lane.b32.xlu0 %v778, 32
    %v781 = vpop.permute.xlu0 %780
    %v783 = vadd.f32 %v773, %v781
    %v784 = vtanh.pop %v783
    %786 = vrot.lane.b32.xlu0 %v784, 64
    %v787 = vpop.permute.xlu0 %786
    %v789 = vmul.f32 %v769, %v787
    %v791 = vrot.slane %v789, 5
    %792 = vrot.lane.b32.xlu0 %v791, 32
    %v793 = vpop.permute.xlu0 %792
    %v794 = vsel %vm173, %v793, 0
    %796 = vmatprep.subr.mxu0 0.0
    %797 = vmatpush1.msra.mxu0 0.0
    %798 = vmatprep.subr.mxu0 0.0
    %799 = vmatpush1.msra.mxu0 0.0
    %800 = vmatprep.subr.mxu0 0.0
    %801 = vmatpush1.msra.mxu0 0.0
    %802 = vmatprep.subr.mxu0 0.0
    %803 = vmatpush1.msra.mxu0 0.0
    %804 = vmatprep.subr.mxu0 0.0
    %805 = vmatpush1.msra.mxu0 0.0
    %806 = vmatprep.subr.mxu0 0.0
    %807 = vmatpush1.msra.mxu0 0.0
    %808 = vmatprep.subr.mxu0 0.0
    %809 = vmatpush1.msra.mxu0 0.0
    %810 = vmatprep.subr.mxu0 0.0
    %811 = vmatpush1.msra.mxu0 0.0
    %812 = vmatprep.subr.mxu0 0.0
    %813 = vmatpush1.msra.mxu0 0.0
    %814 = vmatprep.subr.mxu0 0.0
    %815 = vmatpush1.msra.mxu0 0.0
    %816 = vmatprep.subr.mxu0 0.0
    %817 = vmatpush1.msra.mxu0 0.0
    %818 = vmatprep.subr.mxu0 0.0
    %819 = vmatpush1.msra.mxu0 0.0
    %820 = vmatprep.subr.mxu0 0.0
    %821 = vmatpush1.msra.mxu0 %v169
    %822 = vmatprep.subr.mxu0 0.0
    %823 = vmatpush1.msra.mxu0 %v168
    %824 = vmatprep.subr.mxu0 0.0
    %825 = vmatpush1.msra.mxu0 %v167
    %826 = vmatprep.subr.mxu0 0.0
    %827 = vmatpush1.msra.mxu0 %v166
    %828 = vmatprep.subr.mxu0 0.0
    %829 = vmatpush2.msra.mxu0 0.0
    %830 = vmatprep.subr.mxu0 0.0
    %831 = vmatpush2.msra.mxu0 0.0
    %832 = vmatprep.subr.mxu0 0.0
    %833 = vmatpush2.msra.mxu0 0.0
    %834 = vmatprep.subr.mxu0 0.0
    %835 = vmatpush2.msra.mxu0 0.0
    %836 = vmatprep.subr.mxu0 0.0
    %837 = vmatpush2.msra.mxu0 0.0
    %838 = vmatprep.subr.mxu0 0.0
    %839 = vmatpush2.msra.mxu0 0.0
    %840 = vmatprep.subr.mxu0 0.0
    %841 = vmatpush2.msra.mxu0 0.0
    %842 = vmatprep.subr.mxu0 0.0
    %843 = vmatpush2.msra.mxu0 0.0
    %844 = vmatprep.subr.mxu0 0.0
    %845 = vmatpush2.msra.mxu0 0.0
    %846 = vmatprep.subr.mxu0 0.0
    %847 = vmatpush2.msra.mxu0 0.0
    %848 = vmatprep.subr.mxu0 0.0
    %849 = vmatpush2.msra.mxu0 0.0
    %850 = vmatprep.subr.mxu0 0.0
    %851 = vmatpush2.msra.mxu0 0.0
    %852 = vmatprep.subr.mxu0 0.0
    %853 = vmatpush2.msra.mxu0 0.0
    %854 = vmatprep.subr.mxu0 0.0
    %855 = vmatpush2.msra.mxu0 0.0
    %856 = vmatprep.subr.mxu0 0.0
    %857 = vmatpush2.msra.mxu0 0.0
    %858 = vmatprep.subr.mxu0 0.0
    %859 = vmatpush2.msra.mxu0 0.0
    %860 = vmatprep.mubr.f32.mxu0 0.0
    %861 = vmatmul.mubr.f32.gmra.mxu0 %v794
    %v862 = vpop.f32.mrf.mxu0
    %v863 = vadd.f32 0.0, %v862
    %v864 = vpop.f32.mrf.mxu0
    %865 = vdwg.mxu0
    %v867 = vrot.slane %v863, 2
    %v869 = vadd.f32 %v172, %v867
    %v870 = vtanh.pop %v869
    %v871 = vadd.f32 %v870, 1.0
    %v872 = vmul.f32 %v871, 0.5
    %v874 = vrot.slane %v783, 7
    %v876 = vmul.f32 %v872, %v874
    %878 = vrot.lane.b32.xlu0 %v870, 64
    %v879 = vpop.permute.xlu0 %878
    %v881 = vmul.f32 %v872, %v879
    %883 = vrot.lane.b32.xlu0 %v881, 32
    %v884 = vpop.permute.xlu0 %883
    %v886 = vadd.f32 %v876, %v884
    %v887 = vtanh.pop %v886
    %889 = vrot.lane.b32.xlu0 %v887, 64
    %v890 = vpop.permute.xlu0 %889
    %v892 = vmul.f32 %v872, %v890
    %v894 = vrot.slane %v892, 6
    %895 = vrot.lane.b32.xlu0 %v894, 32
    %v896 = vpop.permute.xlu0 %895
    %v897 = vsel %vm173, %v896, 0
    %899 = vmatprep.subr.mxu0 0.0
    %900 = vmatpush1.msra.mxu0 0.0
    %901 = vmatprep.subr.mxu0 0.0
    %902 = vmatpush1.msra.mxu0 0.0
    %903 = vmatprep.subr.mxu0 0.0
    %904 = vmatpush1.msra.mxu0 0.0
    %905 = vmatprep.subr.mxu0 0.0
    %906 = vmatpush1.msra.mxu0 0.0
    %907 = vmatprep.subr.mxu0 0.0
    %908 = vmatpush1.msra.mxu0 0.0
    %909 = vmatprep.subr.mxu0 0.0
    %910 = vmatpush1.msra.mxu0 0.0
    %911 = vmatprep.subr.mxu0 0.0
    %912 = vmatpush1.msra.mxu0 0.0
    %913 = vmatprep.subr.mxu0 0.0
    %914 = vmatpush1.msra.mxu0 0.0
    %915 = vmatprep.subr.mxu0 0.0
    %916 = vmatpush1.msra.mxu0 0.0
    %917 = vmatprep.subr.mxu0 0.0
    %918 = vmatpush1.msra.mxu0 0.0
    %919 = vmatprep.subr.mxu0 0.0
    %920 = vmatpush1.msra.mxu0 0.0
    %921 = vmatprep.subr.mxu0 0.0
    %922 = vmatpush1.msra.mxu0 0.0
    %923 = vmatprep.subr.mxu0 0.0
    %924 = vmatpush1.msra.mxu0 %v169
    %925 = vmatprep.subr.mxu0 0.0
    %926 = vmatpush1.msra.mxu0 %v168
    %927 = vmatprep.subr.mxu0 0.0
    %928 = vmatpush1.msra.mxu0 %v167
    %929 = vmatprep.subr.mxu0 0.0
    %930 = vmatpush1.msra.mxu0 %v166
    %931 = vmatprep.subr.mxu0 0.0
    %932 = vmatpush2.msra.mxu0 0.0
    %933 = vmatprep.subr.mxu0 0.0
    %934 = vmatpush2.msra.mxu0 0.0
    %935 = vmatprep.subr.mxu0 0.0
    %936 = vmatpush2.msra.mxu0 0.0
    %937 = vmatprep.subr.mxu0 0.0
    %938 = vmatpush2.msra.mxu0 0.0
    %939 = vmatprep.subr.mxu0 0.0
    %940 = vmatpush2.msra.mxu0 0.0
    %941 = vmatprep.subr.mxu0 0.0
    %942 = vmatpush2.msra.mxu0 0.0
    %943 = vmatprep.subr.mxu0 0.0
    %944 = vmatpush2.msra.mxu0 0.0
    %945 = vmatprep.subr.mxu0 0.0
    %946 = vmatpush2.msra.mxu0 0.0
    %947 = vmatprep.subr.mxu0 0.0
    %948 = vmatpush2.msra.mxu0 0.0
    %949 = vmatprep.subr.mxu0 0.0
    %950 = vmatpush2.msra.mxu0 0.0
    %951 = vmatprep.subr.mxu0 0.0
    %952 = vmatpush2.msra.mxu0 0.0
    %953 = vmatprep.subr.mxu0 0.0
    %954 = vmatpush2.msra.mxu0 0.0
    %955 = vmatprep.subr.mxu0 0.0
    %956 = vmatpush2.msra.mxu0 0.0
    %957 = vmatprep.subr.mxu0 0.0
    %958 = vmatpush2.msra.mxu0 0.0
    %959 = vmatprep.subr.mxu0 0.0
    %960 = vmatpush2.msra.mxu0 0.0
    %961 = vmatprep.subr.mxu0 0.0
    %962 = vmatpush2.msra.mxu0 0.0
    %963 = vmatprep.mubr.f32.mxu0 0.0
    %964 = vmatmul.mubr.f32.gmra.mxu0 %v897
    %v965 = vpop.f32.mrf.mxu0
    %v966 = vadd.f32 0.0, %v965
    %v967 = vpop.f32.mrf.mxu0
    %968 = vdwg.mxu0
    %v970 = vrot.slane %v966, 1
    %v972 = vadd.f32 %v172, %v970
    %v973 = vtanh.pop %v972
    %v974 = vadd.f32 %v973, 1.0
    %v975 = vmul.f32 %v974, 0.5
    %v977 = vrot.slane %v886, 7
    %v979 = vmul.f32 %v975, %v977
    %981 = vrot.lane.b32.xlu0 %v973, 64
    %v982 = vpop.permute.xlu0 %981
    %v984 = vmul.f32 %v975, %v982
    %986 = vrot.lane.b32.xlu0 %v984, 32
    %v987 = vpop.permute.xlu0 %986
    %v989 = vadd.f32 %v979, %v987
    %v990 = vtanh.pop %v989
    %992 = vrot.lane.b32.xlu0 %v990, 64
    %v993 = vpop.permute.xlu0 %992
    %v995 = vmul.f32 %v975, %v993
    %vm996 = vcmask 1040384
    %v997 = vsel %vm996, %v275, %v377
    %vm998 = vcmask 1041408
    %v999 = vsel %vm998, %v997, %v480
    %vm1000 = vcmask 1042432
    %v1001 = vsel %vm1000, %v999, %v583
    %vm1002 = vcmask 1043456
    %v1003 = vsel %vm1002, %v1001, %v686
    %vm1004 = vcmask 1044480
    %v1005 = vsel %vm1004, %v1003, %v789
    %vm1006 = vcmask 1045504
    %v1007 = vsel %vm1006, %v1005, %v892
    %vm1008 = vcmask 1046528
    %v1009 = vsel %vm1008, %v1007, %v995
    %1011 = vrot.lane.b32.xlu0 %v1009, 32
    %v1012 = vpop.permute.xlu0 %1011
    %1014 = vst.msk [vmem:[#allocation5] sm:$0xff] %vm173, %v1012
    %1016 = vrot.lane.b32.xlu0 %v995, 32
    %v1017 = vpop.permute.xlu0 %1016
    %vm1019 = vcmask 261127
    %1020 = vst.msk [vmem:[#allocation2 - $0x7] sm:$0x80] %vm1019, %v1017
    %1022 = vrot.lane.b32.xlu0 %v989, 96
    %v1023 = vpop.permute.xlu0 %1022
    %1025 = vst.msk [vmem:[#allocation3 - $0x7] sm:$0x80] %vm1019, %v1023
    %v1026 = vld [vmem:[#allocation5] sm:$0xff]
    %v1027 = vld [vmem:[#allocation10] sm:$0xff]
    %v1028 = vld [vmem:[#allocation10 + $0x8] sm:$0xff]
    %v1029 = vld [vmem:[#allocation10 + $0x10] sm:$0xff]
    %v1030 = vld [vmem:[#allocation10 + $0x18] sm:$0xff]
    %v1031 = vld [vmem:[%s5] sm:$0x1]
    %v1033 = vlaneseq
    %v1034 = vshrl.u32 %v1033, 7
    %v1035 = vsub.s32 0, %v1034
    %v1036 = vrot.slane %v1031, %v1035
    %v1039 = vsel %vm173, %v1026, 0
    %1041 = vmatprep.subr.mxu0 0.0
    %1042 = vmatpush1.msra.mxu0 0.0
    %1043 = vmatprep.subr.mxu0 0.0
    %1044 = vmatpush1.msra.mxu0 0.0
    %1045 = vmatprep.subr.mxu0 0.0
    %1046 = vmatpush1.msra.mxu0 0.0
    %1047 = vmatprep.subr.mxu0 0.0
    %1048 = vmatpush1.msra.mxu0 0.0
    %1049 = vmatprep.subr.mxu0 0.0
    %1050 = vmatpush1.msra.mxu0 0.0
    %1051 = vmatprep.subr.mxu0 0.0
    %1052 = vmatpush1.msra.mxu0 0.0
    %1053 = vmatprep.subr.mxu0 0.0
    %1054 = vmatpush1.msra.mxu0 0.0
    %1055 = vmatprep.subr.mxu0 0.0
    %1056 = vmatpush1.msra.mxu0 0.0
    %1057 = vmatprep.subr.mxu0 0.0
    %1058 = vmatpush1.msra.mxu0 0.0
    %1059 = vmatprep.subr.mxu0 0.0
    %1060 = vmatpush1.msra.mxu0 0.0
    %1061 = vmatprep.subr.mxu0 0.0
    %1062 = vmatpush1.msra.mxu0 0.0
    %1063 = vmatprep.subr.mxu0 0.0
    %1064 = vmatpush1.msra.mxu0 0.0
    %1065 = vmatprep.subr.mxu0 0.0
    %1066 = vmatpush1.msra.mxu0 %v1030
    %1067 = vmatprep.subr.mxu0 0.0
    %1068 = vmatpush1.msra.mxu0 %v1029
    %1069 = vmatprep.subr.mxu0 0.0
    %1070 = vmatpush1.msra.mxu0 %v1028
    %1071 = vmatprep.subr.mxu0 0.0
    %1072 = vmatpush1.msra.mxu0 %v1027
    %1073 = vmatprep.subr.mxu0 0.0
    %1074 = vmatpush2.msra.mxu0 0.0
    %1075 = vmatprep.subr.mxu0 0.0
    %1076 = vmatpush2.msra.mxu0 0.0
    %1077 = vmatprep.subr.mxu0 0.0
    %1078 = vmatpush2.msra.mxu0 0.0
    %1079 = vmatprep.subr.mxu0 0.0
    %1080 = vmatpush2.msra.mxu0 0.0
    %1081 = vmatprep.subr.mxu0 0.0
    %1082 = vmatpush2.msra.mxu0 0.0
    %1083 = vmatprep.subr.mxu0 0.0
    %1084 = vmatpush2.msra.mxu0 0.0
    %1085 = vmatprep.subr.mxu0 0.0
    %1086 = vmatpush2.msra.mxu0 0.0
    %1087 = vmatprep.subr.mxu0 0.0
    %1088 = vmatpush2.msra.mxu0 0.0
    %1089 = vmatprep.subr.mxu0 0.0
    %1090 = vmatpush2.msra.mxu0 0.0
    %1091 = vmatprep.subr.mxu0 0.0
    %1092 = vmatpush2.msra.mxu0 0.0
    %1093 = vmatprep.subr.mxu0 0.0
    %1094 = vmatpush2.msra.mxu0 0.0
    %1095 = vmatprep.subr.mxu0 0.0
    %1096 = vmatpush2.msra.mxu0 0.0
    %1097 = vmatprep.subr.mxu0 0.0
    %1098 = vmatpush2.msra.mxu0 0.0
    %1099 = vmatprep.subr.mxu0 0.0
    %1100 = vmatpush2.msra.mxu0 0.0
    %1101 = vmatprep.subr.mxu0 0.0
    %1102 = vmatpush2.msra.mxu0 0.0
    %1103 = vmatprep.subr.mxu0 0.0
    %1104 = vmatpush2.msra.mxu0 0.0
    %1105 = vmatprep.mubr.f32.mxu0 0.0
    %1106 = vmatmul.mubr.f32.gmra.mxu0 %v1039
    %v1107 = vpop.f32.mrf.mxu0
    %v1108 = vadd.f32 %v1036, %v1107
    %v1109 = vpop.f32.mrf.mxu0
    %1110 = vdwg.mxu0
    %1111 = vst [vmem:[%s6] sm:$0xff] %v1108
    // Predicated region
    $region42: #{lstm_tagger_forward.1} parent=1 // pred_check
      _
    $region43: #{lstm_tagger_forward.1} parent=1 // pred_check_branch
      %1113 = sbr.rel (0) target = $region45
    $region44: #{lstm_tagger_forward.1} parent=1 // pred_region
      _
    $region45: #{lstm_tagger_forward.1} parent=1 // pred_fallthru
      _
    // Predicated region
    $region46: #{lstm_tagger_forward.1} parent=1 // pred_check
      _
    $region47: #{lstm_tagger_forward.1} parent=1 // pred_check_branch
      %1115 = sbr.rel (0) target = $region49
    $region48: #{lstm_tagger_forward.1} parent=1 // pred_region
      _
    $region49: #{lstm_tagger_forward.1} parent=1 // pred_fallthru
      _
    %1116 = vsyncpa [#allocation7], 1
    %1117 = vsyncpa [#allocation9], 1

</llo_original>
